<compile_context>
chip_gen: v7x
topology: tpu7x:2x2x1
jax: 0.10.0
libtpu: 0.0.40
codegen_flags: <defaults>
</compile_context>

<pallas_src>
import functools
import math

import jax
import jax.numpy as jnp
from jax.experimental import pallas as pl
from jax.experimental.pallas import tpu as pltpu


_VMEM_SPEC = pl.BlockSpec(memory_space=pltpu.MemorySpace.VMEM)
_ANY_SPEC = pl.BlockSpec(memory_space=pl.ANY)
_LRELU_SLOPE = 0.2
_BN_EPS = 0.8
_HIDDEN = (128, 256, 512, 1024)


# ---------------------------------------------------------------------------
# Fused Pallas kernel: the whole generator MLP in one VMEM-resident pass.
# ---------------------------------------------------------------------------
def _generator_fused_kernel(z_ref,
                            w1_ref, w2_ref, w3_ref,
                            w4_hbm_ref, w5_hbm_ref,
                            b_ref,
                            o_ref,
                            w4_vmem, w5_vmem, dma_sems,
                            *, bias_splits):
    # Kick off the DMAs for the layer-4/5 weights (~75% of weight bytes) so
    # they overlap the layer 1-3 matmuls; wait only right before they're used.
    cp4 = pltpu.make_async_copy(w4_hbm_ref, w4_vmem, dma_sems.at[0])
    cp5 = pltpu.make_async_copy(w5_hbm_ref, w5_vmem, dma_sems.at[1])
    cp4.start()
    cp5.start()

    def dot(x, w):
        # bf16 x bf16 on the MXU, f32 accumulation.
        return jnp.dot(x.astype(jnp.bfloat16), w,
                       preferred_element_type=jnp.float32)

    def lrelu(y):
        # max(y, slope*y) == LeakyReLU(slope) for 0 < slope < 1: vmul + vmax.
        return jnp.maximum(y, _LRELU_SLOPE * y)

    def batchnorm(y):
        # Training-mode BatchNorm1d over the batch axis: per-batch mean,
        # biased variance, eps=0.8.  Fresh-init affine (gamma=1, beta=0) is
        # the identity and is folded out of the kernel.
        mean = jnp.mean(y, axis=0, keepdims=True)
        d = y - mean                                   # reused below
        var = jnp.mean(d * d, axis=0, keepdims=True)   # biased variance
        return d * jax.lax.rsqrt(var + _BN_EPS)

    def bias(i):
        # Static, 128-lane-aligned slices of the concatenated bias vector.
        return b_ref[:, bias_splits[i]:bias_splits[i + 1]]

    h = lrelu(dot(z_ref[...], w1_ref[...]) + bias(0))
    h = lrelu(batchnorm(dot(h, w2_ref[...]) + bias(1)))
    h = lrelu(batchnorm(dot(h, w3_ref[...]) + bias(2)))
    cp4.wait()
    h = lrelu(batchnorm(dot(h, w4_vmem[...]) + bias(3)))
    cp5.wait()
    o_ref[...] = jnp.tanh(dot(h, w5_vmem[...]) + bias(4))


# ---------------------------------------------------------------------------
# Parameter construction (PyTorch-Linear-style U(-1/sqrt(fan_in), +1/sqrt(..)))
# Weights are bf16 (halves HBM->VMEM DMA); biases stay f32 and are packed into
# a single (1, sum(out_feats)) vector.  The final layer's columns are
# zero-padded up to a multiple of 128 for a lane-dense output store.
# ---------------------------------------------------------------------------
def _round_up(x, m):
    return ((x + m - 1) // m) * m


def init_params(key, latent_dim, out_dim):
    out_dim_padded = max(128, _round_up(out_dim, 128))
    dims = [latent_dim, *_HIDDEN, out_dim]
    params = {}
    biases = []
    keys = jax.random.split(key, 2 * (len(dims) - 1))
    for i in range(len(dims) - 1):
        fan_in, fan_out = dims[i], dims[i + 1]
        bound = 1.0 / math.sqrt(fan_in)
        w = jax.random.uniform(keys[2 * i], (fan_in, fan_out),
                               jnp.float32, -bound, bound)
        b = jax.random.uniform(keys[2 * i + 1], (1, fan_out),
                               jnp.float32, -bound, bound)
        if i == len(dims) - 2 and fan_out != out_dim_padded:
            # Lane-dense final store: pad output features to a multiple of 128.
            pad = out_dim_padded - fan_out
            w = jnp.pad(w, ((0, 0), (0, pad)))
            b = jnp.pad(b, ((0, 0), (0, pad)))
        params[f"w{i + 1}"] = w.astype(jnp.bfloat16)
        biases.append(b)
    params["b_all"] = jnp.concatenate(biases, axis=1)   # (1, 2048) f32
    return params


# ---------------------------------------------------------------------------
# Cost estimate for the fused call (advisory, for XLA's scheduler).
# ---------------------------------------------------------------------------
def _cost_estimate(batch, params, out_padded):
    flops = 0
    bytes_accessed = 0
    for i in range(1, 6):
        w = params[f"w{i}"]
        flops += 2 * batch * w.shape[0] * w.shape[1]
        bytes_accessed += w.size * w.dtype.itemsize
    bytes_accessed += params["b_all"].size * params["b_all"].dtype.itemsize
    bytes_accessed += batch * params["w1"].shape[0] * 2      # z (bf16)
    bytes_accessed += batch * out_padded * 4                 # output (f32)
    transcendentals = batch * out_padded + sum(_HIDDEN[1:])  # tanh + BN rsqrt
    return pl.CostEstimate(flops=int(flops),
                           transcendentals=int(transcendentals),
                           bytes_accessed=int(bytes_accessed))


# ---------------------------------------------------------------------------
# Full generator forward pass (one pallas_call + slice/reshape in JAX).
# ---------------------------------------------------------------------------
@functools.partial(jax.jit, static_argnames=("channels", "img_size"))
def generator_forward(z, params, *, channels, img_size):
    out_dim = channels * img_size * img_size
    out_padded = params["w5"].shape[1]
    batch = z.shape[0]

    # Static offsets of each layer's bias inside the packed (1, 2048) vector.
    layer_widths = [params[f"w{i}"].shape[1] for i in range(1, 6)]
    bias_splits = [0]
    for w in layer_widths:
        bias_splits.append(bias_splits[-1] + w)
    bias_splits = tuple(bias_splits)

    kernel = functools.partial(_generator_fused_kernel,
                               bias_splits=bias_splits)

    img_padded = pl.pallas_call(
        kernel,
        out_shape=jax.ShapeDtypeStruct((batch, out_padded), jnp.float32),
        in_specs=[_VMEM_SPEC,                          # z (bf16)
                  _VMEM_SPEC, _VMEM_SPEC, _VMEM_SPEC,  # w1..w3 (auto-DMA)
                  _ANY_SPEC, _ANY_SPEC,                # w4, w5 (manual DMA)
                  _VMEM_SPEC],                         # packed biases
        out_specs=_VMEM_SPEC,
        scratch_shapes=[
            pltpu.VMEM(params["w4"].shape, jnp.bfloat16),
            pltpu.VMEM(params["w5"].shape, jnp.bfloat16),
            pltpu.SemaphoreType.DMA((2,)),
        ],
        cost_estimate=_cost_estimate(batch, params, out_padded),
    )(z.astype(jnp.bfloat16),
      params["w1"], params["w2"], params["w3"],
      params["w4"], params["w5"],
      params["b_all"])

    # Drop the lane-padding, then img.view(B, C, H, W) -- same element order
    # as PyTorch's .view.
    img = img_padded[:, :out_dim]
    return img.reshape(batch, channels, img_size, img_size)


if __name__ == "__main__":
    # Small shapes consistent with the module: opt.latent_dim=32,
    # opt.channels=1, opt.img_size=8.  B=16 fills bf16 sublane-packed vregs.
    B, LATENT, C, IMG = 16, 32, 1, 8
    out_dim = C * IMG * IMG

    key = jax.random.PRNGKey(0)
    k_params, k_z = jax.random.split(key)
    params = init_params(k_params, LATENT, out_dim)
    z = jax.random.normal(k_z, (B, LATENT), jnp.float32)

    img = generator_forward(z, params, channels=C, img_size=IMG)
    jax.block_until_ready(img)

    assert img.shape == (B, C, IMG, IMG), img.shape
    assert bool(jnp.all(jnp.isfinite(img)))
    assert bool(jnp.all(jnp.abs(img) <= 1.0))  # tanh output range
    print("KERNEL_OK")
</pallas_src>

<mosaic_0001>
module attributes {stable_mosaic.version = 11 : i64} {
  func.func @_generator_fused_kernel(%arg0: memref<16x32xbf16, #tpu.memory_space<vmem>>, %arg1: memref<32x128xbf16, #tpu.memory_space<vmem>>, %arg2: memref<128x256xbf16, #tpu.memory_space<vmem>>, %arg3: memref<256x512xbf16, #tpu.memory_space<vmem>>, %arg4: memref<512x1024xbf16, #tpu.memory_space<any>>, %arg5: memref<1024x128xbf16, #tpu.memory_space<any>>, %arg6: memref<1x2048xf32, #tpu.memory_space<vmem>>, %arg7: memref<16x128xf32, #tpu.memory_space<vmem>>, %arg8: memref<512x1024xbf16, #tpu.memory_space<vmem>>, %arg9: memref<1024x128xbf16, #tpu.memory_space<vmem>>, %arg10: memref<2x!tpu.dma_semaphore, #tpu.memory_space<semaphore_mem>>) attributes {dimension_semantics = [], scalar_prefetch = 0 : i64, scratch_operands = 3 : i64, tpu.core_type = #tpu.core_type<tc>} {
    %c0_i32 = arith.constant 0 : i32
    %0 = tpu.memref_slice %arg10[%c0_i32] : memref<2x!tpu.dma_semaphore, #tpu.memory_space<semaphore_mem>> -> memref<1x!tpu.dma_semaphore, #tpu.memory_space<semaphore_mem>>
    %1 = tpu.memref_squeeze %0 : memref<1x!tpu.dma_semaphore, #tpu.memory_space<semaphore_mem>> -> memref<!tpu.dma_semaphore, #tpu.memory_space<semaphore_mem>>
    tpu.enqueue_dma source(%arg4 : memref<512x1024xbf16, #tpu.memory_space<any>>) target(%arg8 : memref<512x1024xbf16, #tpu.memory_space<vmem>>) target_semaphore(%1 : memref<!tpu.dma_semaphore, #tpu.memory_space<semaphore_mem>>)
    %c1_i32 = arith.constant 1 : i32
    %2 = tpu.memref_slice %arg10[%c1_i32] : memref<2x!tpu.dma_semaphore, #tpu.memory_space<semaphore_mem>> -> memref<1x!tpu.dma_semaphore, #tpu.memory_space<semaphore_mem>>
    %3 = tpu.memref_squeeze %2 : memref<1x!tpu.dma_semaphore, #tpu.memory_space<semaphore_mem>> -> memref<!tpu.dma_semaphore, #tpu.memory_space<semaphore_mem>>
    tpu.enqueue_dma source(%arg5 : memref<1024x128xbf16, #tpu.memory_space<any>>) target(%arg9 : memref<1024x128xbf16, #tpu.memory_space<vmem>>) target_semaphore(%3 : memref<!tpu.dma_semaphore, #tpu.memory_space<semaphore_mem>>)
    %c0 = arith.constant 0 : index
    %c0_0 = arith.constant 0 : index
    %4 = vector.load %arg0[%c0, %c0_0] : memref<16x32xbf16, #tpu.memory_space<vmem>>, vector<16x32xbf16>
    %c0_1 = arith.constant 0 : index
    %c0_2 = arith.constant 0 : index
    %5 = vector.load %arg1[%c0_1, %c0_2] : memref<32x128xbf16, #tpu.memory_space<vmem>>, vector<32x128xbf16>
    %cst = arith.constant dense<0.000000e+00> : vector<16x128xf32>
    %6 = tpu.matmul %4, %5, %cst {dimension_numbers = #tpu.dot_dimension_numbers<[1], [0], [0], [1], [0, 0, 1, 1], [], []>} : vector<16x32xbf16>, vector<32x128xbf16>, vector<16x128xf32> -> vector<16x128xf32>
    %c0_3 = arith.constant 0 : index
    %c0_4 = arith.constant 0 : index
    %7 = vector.load %arg6[%c0_3, %c0_4] : memref<1x2048xf32, #tpu.memory_space<vmem>>, vector<1x128xf32>
    %8 = vector.broadcast %7 : vector<1x128xf32> to vector<16x128xf32>
    %9 = arith.addf %6, %8 : vector<16x128xf32>
    %cst_5 = arith.constant 2.000000e-01 : f32
    %10 = vector.broadcast %cst_5 : f32 to vector<16x128xf32>
    %11 = arith.mulf %10, %9 : vector<16x128xf32>
    %12 = arith.maximumf %9, %11 : vector<16x128xf32>
    %c0_6 = arith.constant 0 : index
    %c0_7 = arith.constant 0 : index
    %13 = vector.load %arg2[%c0_6, %c0_7] : memref<128x256xbf16, #tpu.memory_space<vmem>>, vector<128x256xbf16>
    %14 = arith.truncf %12 : vector<16x128xf32> to vector<16x128xbf16>
    %cst_8 = arith.constant dense<0.000000e+00> : vector<16x256xf32>
    %15 = tpu.matmul %14, %13, %cst_8 {dimension_numbers = #tpu.dot_dimension_numbers<[1], [0], [0], [1], [0, 0, 1, 1], [], []>} : vector<16x128xbf16>, vector<128x256xbf16>, vector<16x256xf32> -> vector<16x256xf32>
    %c0_9 = arith.constant 0 : index
    %c128 = arith.constant 128 : index
    %16 = vector.load %arg6[%c0_9, %c128] : memref<1x2048xf32, #tpu.memory_space<vmem>>, vector<1x256xf32>
    %17 = vector.broadcast %16 : vector<1x256xf32> to vector<16x256xf32>
    %18 = arith.addf %15, %17 : vector<16x256xf32>
    %cst_10 = arith.constant dense<0.000000e+00> : vector<256xf32>
    %19 = vector.multi_reduction <add>, %18, %cst_10 [0] : vector<16x256xf32> to vector<256xf32>
    %20 = vector.shape_cast %19 : vector<256xf32> to vector<1x256xf32>
    %cst_11 = arith.constant 1.600000e+01 : f32
    %21 = vector.broadcast %cst_11 : f32 to vector<1x256xf32>
    %22 = arith.divf %20, %21 : vector<1x256xf32>
    %23 = vector.broadcast %22 : vector<1x256xf32> to vector<16x256xf32>
    %24 = arith.subf %18, %23 : vector<16x256xf32>
    %25 = arith.mulf %24, %24 : vector<16x256xf32>
    %cst_12 = arith.constant dense<0.000000e+00> : vector<256xf32>
    %26 = vector.multi_reduction <add>, %25, %cst_12 [0] : vector<16x256xf32> to vector<256xf32>
    %27 = vector.shape_cast %26 : vector<256xf32> to vector<1x256xf32>
    %cst_13 = arith.constant 1.600000e+01 : f32
    %28 = vector.broadcast %cst_13 : f32 to vector<1x256xf32>
    %29 = arith.divf %27, %28 : vector<1x256xf32>
    %cst_14 = arith.constant 8.000000e-01 : f32
    %30 = vector.broadcast %cst_14 : f32 to vector<1x256xf32>
    %31 = arith.addf %29, %30 : vector<1x256xf32>
    %32 = math.rsqrt %31 : vector<1x256xf32>
    %33 = vector.broadcast %32 : vector<1x256xf32> to vector<16x256xf32>
    %34 = arith.mulf %24, %33 : vector<16x256xf32>
    %cst_15 = arith.constant 2.000000e-01 : f32
    %35 = vector.broadcast %cst_15 : f32 to vector<16x256xf32>
    %36 = arith.mulf %35, %34 : vector<16x256xf32>
    %37 = arith.maximumf %34, %36 : vector<16x256xf32>
    %c0_16 = arith.constant 0 : index
    %c0_17 = arith.constant 0 : index
    %38 = vector.load %arg3[%c0_16, %c0_17] : memref<256x512xbf16, #tpu.memory_space<vmem>>, vector<256x512xbf16>
    %39 = arith.truncf %37 : vector<16x256xf32> to vector<16x256xbf16>
    %cst_18 = arith.constant dense<0.000000e+00> : vector<16x512xf32>
    %40 = tpu.matmul %39, %38, %cst_18 {dimension_numbers = #tpu.dot_dimension_numbers<[1], [0], [0], [1], [0, 0, 1, 1], [], []>} : vector<16x256xbf16>, vector<256x512xbf16>, vector<16x512xf32> -> vector<16x512xf32>
    %c0_19 = arith.constant 0 : index
    %c384 = arith.constant 384 : index
    %41 = vector.load %arg6[%c0_19, %c384] : memref<1x2048xf32, #tpu.memory_space<vmem>>, vector<1x512xf32>
    %42 = vector.broadcast %41 : vector<1x512xf32> to vector<16x512xf32>
    %43 = arith.addf %40, %42 : vector<16x512xf32>
    %cst_20 = arith.constant dense<0.000000e+00> : vector<512xf32>
    %44 = vector.multi_reduction <add>, %43, %cst_20 [0] : vector<16x512xf32> to vector<512xf32>
    %45 = vector.shape_cast %44 : vector<512xf32> to vector<1x512xf32>
    %cst_21 = arith.constant 1.600000e+01 : f32
    %46 = vector.broadcast %cst_21 : f32 to vector<1x512xf32>
    %47 = arith.divf %45, %46 : vector<1x512xf32>
    %48 = vector.broadcast %47 : vector<1x512xf32> to vector<16x512xf32>
    %49 = arith.subf %43, %48 : vector<16x512xf32>
    %50 = arith.mulf %49, %49 : vector<16x512xf32>
    %cst_22 = arith.constant dense<0.000000e+00> : vector<512xf32>
    %51 = vector.multi_reduction <add>, %50, %cst_22 [0] : vector<16x512xf32> to vector<512xf32>
    %52 = vector.shape_cast %51 : vector<512xf32> to vector<1x512xf32>
    %cst_23 = arith.constant 1.600000e+01 : f32
    %53 = vector.broadcast %cst_23 : f32 to vector<1x512xf32>
    %54 = arith.divf %52, %53 : vector<1x512xf32>
    %cst_24 = arith.constant 8.000000e-01 : f32
    %55 = vector.broadcast %cst_24 : f32 to vector<1x512xf32>
    %56 = arith.addf %54, %55 : vector<1x512xf32>
    %57 = math.rsqrt %56 : vector<1x512xf32>
    %58 = vector.broadcast %57 : vector<1x512xf32> to vector<16x512xf32>
    %59 = arith.mulf %49, %58 : vector<16x512xf32>
    %cst_25 = arith.constant 2.000000e-01 : f32
    %60 = vector.broadcast %cst_25 : f32 to vector<16x512xf32>
    %61 = arith.mulf %60, %59 : vector<16x512xf32>
    %62 = arith.maximumf %59, %61 : vector<16x512xf32>
    %c0_i32_26 = arith.constant 0 : i32
    %63 = tpu.memref_slice %arg10[%c0_i32_26] : memref<2x!tpu.dma_semaphore, #tpu.memory_space<semaphore_mem>> -> memref<1x!tpu.dma_semaphore, #tpu.memory_space<semaphore_mem>>
    %64 = tpu.memref_squeeze %63 : memref<1x!tpu.dma_semaphore, #tpu.memory_space<semaphore_mem>> -> memref<!tpu.dma_semaphore, #tpu.memory_space<semaphore_mem>>
    tpu.wait_dma2 semaphore(%64 : memref<!tpu.dma_semaphore, #tpu.memory_space<semaphore_mem>>) src(%arg4 : memref<512x1024xbf16, #tpu.memory_space<any>>) dst(%arg8 : memref<512x1024xbf16, #tpu.memory_space<vmem>>)
    %c0_27 = arith.constant 0 : index
    %c0_28 = arith.constant 0 : index
    %65 = vector.load %arg8[%c0_27, %c0_28] : memref<512x1024xbf16, #tpu.memory_space<vmem>>, vector<512x1024xbf16>
    %66 = arith.truncf %62 : vector<16x512xf32> to vector<16x512xbf16>
    %cst_29 = arith.constant dense<0.000000e+00> : vector<16x1024xf32>
    %67 = tpu.matmul %66, %65, %cst_29 {dimension_numbers = #tpu.dot_dimension_numbers<[1], [0], [0], [1], [0, 0, 1, 1], [], []>} : vector<16x512xbf16>, vector<512x1024xbf16>, vector<16x1024xf32> -> vector<16x1024xf32>
    %c0_30 = arith.constant 0 : index
    %c896 = arith.constant 896 : index
    %68 = vector.load %arg6[%c0_30, %c896] : memref<1x2048xf32, #tpu.memory_space<vmem>>, vector<1x1024xf32>
    %69 = vector.broadcast %68 : vector<1x1024xf32> to vector<16x1024xf32>
    %70 = arith.addf %67, %69 : vector<16x1024xf32>
    %cst_31 = arith.constant dense<0.000000e+00> : vector<1024xf32>
    %71 = vector.multi_reduction <add>, %70, %cst_31 [0] : vector<16x1024xf32> to vector<1024xf32>
    %72 = vector.shape_cast %71 : vector<1024xf32> to vector<1x1024xf32>
    %cst_32 = arith.constant 1.600000e+01 : f32
    %73 = vector.broadcast %cst_32 : f32 to vector<1x1024xf32>
    %74 = arith.divf %72, %73 : vector<1x1024xf32>
    %75 = vector.broadcast %74 : vector<1x1024xf32> to vector<16x1024xf32>
    %76 = arith.subf %70, %75 : vector<16x1024xf32>
    %77 = arith.mulf %76, %76 : vector<16x1024xf32>
    %cst_33 = arith.constant dense<0.000000e+00> : vector<1024xf32>
    %78 = vector.multi_reduction <add>, %77, %cst_33 [0] : vector<16x1024xf32> to vector<1024xf32>
    %79 = vector.shape_cast %78 : vector<1024xf32> to vector<1x1024xf32>
    %cst_34 = arith.constant 1.600000e+01 : f32
    %80 = vector.broadcast %cst_34 : f32 to vector<1x1024xf32>
    %81 = arith.divf %79, %80 : vector<1x1024xf32>
    %cst_35 = arith.constant 8.000000e-01 : f32
    %82 = vector.broadcast %cst_35 : f32 to vector<1x1024xf32>
    %83 = arith.addf %81, %82 : vector<1x1024xf32>
    %84 = math.rsqrt %83 : vector<1x1024xf32>
    %85 = vector.broadcast %84 : vector<1x1024xf32> to vector<16x1024xf32>
    %86 = arith.mulf %76, %85 : vector<16x1024xf32>
    %cst_36 = arith.constant 2.000000e-01 : f32
    %87 = vector.broadcast %cst_36 : f32 to vector<16x1024xf32>
    %88 = arith.mulf %87, %86 : vector<16x1024xf32>
    %89 = arith.maximumf %86, %88 : vector<16x1024xf32>
    %c1_i32_37 = arith.constant 1 : i32
    %90 = tpu.memref_slice %arg10[%c1_i32_37] : memref<2x!tpu.dma_semaphore, #tpu.memory_space<semaphore_mem>> -> memref<1x!tpu.dma_semaphore, #tpu.memory_space<semaphore_mem>>
    %91 = tpu.memref_squeeze %90 : memref<1x!tpu.dma_semaphore, #tpu.memory_space<semaphore_mem>> -> memref<!tpu.dma_semaphore, #tpu.memory_space<semaphore_mem>>
    tpu.wait_dma2 semaphore(%91 : memref<!tpu.dma_semaphore, #tpu.memory_space<semaphore_mem>>) src(%arg5 : memref<1024x128xbf16, #tpu.memory_space<any>>) dst(%arg9 : memref<1024x128xbf16, #tpu.memory_space<vmem>>)
    %c0_38 = arith.constant 0 : index
    %c0_39 = arith.constant 0 : index
    %92 = vector.load %arg9[%c0_38, %c0_39] : memref<1024x128xbf16, #tpu.memory_space<vmem>>, vector<1024x128xbf16>
    %93 = arith.truncf %89 : vector<16x1024xf32> to vector<16x1024xbf16>
    %cst_40 = arith.constant dense<0.000000e+00> : vector<16x128xf32>
    %94 = tpu.matmul %93, %92, %cst_40 {dimension_numbers = #tpu.dot_dimension_numbers<[1], [0], [0], [1], [0, 0, 1, 1], [], []>} : vector<16x1024xbf16>, vector<1024x128xbf16>, vector<16x128xf32> -> vector<16x128xf32>
    %c0_41 = arith.constant 0 : index
    %c1920 = arith.constant 1920 : index
    %95 = vector.load %arg6[%c0_41, %c1920] : memref<1x2048xf32, #tpu.memory_space<vmem>>, vector<1x128xf32>
    %96 = vector.broadcast %95 : vector<1x128xf32> to vector<16x128xf32>
    %97 = arith.addf %94, %96 : vector<16x128xf32>
    %98 = math.tanh %97 : vector<16x128xf32>
    %c0_42 = arith.constant 0 : index
    %c0_43 = arith.constant 0 : index
    %99 = vector.load %arg7[%c0_42, %c0_43] : memref<16x128xf32, #tpu.memory_space<vmem>>, vector<16x128xf32>
    tpu.vector_store %arg7[%c0_42, %c0_43], %98 {strides = array<i32>} : memref<16x128xf32, #tpu.memory_space<vmem>>, vector<16x128xf32>,
    return
  }
}

</mosaic_0001>

<llo_original>
// kernel: generator_forward.1
$region0: #{generator_forward.1}
  #allocation0 [shape = 'u32[]', space=smem, size = 0x4, offset = 0x4, fixed_abs, tag = 'smem constant byte address 0x4 - core index']
  #allocation1 [shape = 'u32[144,128]{1,0:T(1,128)}', space=vmem, size = 0x12000, scoped, tag = 'internal scratch']
  #allocation2 [shape = 'bf16[512,1024]{1,0:T(16,128)(2,1)}', space=vmem, size = 0x100000, scoped, tag = 'scratch operand']
  #allocation3 [shape = 'bf16[1024,128]{1,0:T(16,128)(2,1)}', space=vmem, size = 0x40000, scoped, tag = 'scratch operand']
  #allocation4 [shape = 's32[2]{0}', space=sflag, size = 0x8, scoped, tag = 'scratch operand']
  #allocation10 [shape = 's32[]', space=sflag, size = 0x4, offset = 0, fixed_abs, tag = 'sflag constant byte address 0x0 - dummy sync flag']
  #allocation12 [shape = 's32[]', space=sflag, size = 0x4, offset = 0, fixed_abs, tag = 'sflag constant byte address 0x0 - dummy sync flag']
  #allocation13 [shape = 's32[]', space=sflag, size = 0x4, offset = 0, fixed_abs, tag = 'sflag constant byte address 0x0 - dummy sync flag']
  #allocation14 [shape = 'u32[]', space=smem, size = 0x4, offset = 0x44, fixed_abs, tag = 'smem constant byte address 0x44 - assertion arg 0']
  #allocation15 [shape = 'u32[]', space=smem, size = 0x4, offset = 0x48, fixed_abs, tag = 'smem constant byte address 0x48 - assertion arg 1']
  %s0 = inlined_call_operand.vmem [shape: bf16[16,32], index: 0, kind: input, shape index: {}]
  %s1 = inlined_call_operand.vmem [shape: bf16[32,128], index: 1, kind: input, shape index: {}]
  %s2 = inlined_call_operand.hbm [shape: bf16[128,256], index: 2, kind: input, shape index: {}]
  %s3 = inlined_call_operand.hbm [shape: bf16[256,512], index: 3, kind: input, shape index: {}]
  %s4 = inlined_call_operand.hbm [shape: bf16[512,1024], index: 4, kind: input, shape index: {}]
  %s5 = inlined_call_operand.hbm [shape: bf16[1024,128], index: 5, kind: input, shape index: {}]
  %s6 = inlined_call_operand.hbm [shape: f32[1,2048], index: 6, kind: input, shape index: {}]
  %s7 = inlined_call_operand.vmem [shape: f32[16,128], index: 7, kind: output, shape index: {}]
  %s8 = sld [smem:[#allocation0]]
  $region46: #{generator_forward.1} parent=0
    _
  %s10 = ssub.s32 1, %s8
  %s11 = scalar_select 0, %s10, %s8
  $region1: #{generator_forward.1} parent=0
    #allocation5 [shape = 'u8[65536]{0}', space=vmem, size = 0x10000, scoped, tag = 'input window, operand 2, single buffered']
    #allocation6 [shape = 's32[1]{0}', space=sflag, size = 0x4, scoped, tag = 'scoped memory for generator_forward.1']
    #allocation7 [shape = 'u8[262144]{0}', space=vmem, size = 0x40000, scoped, tag = 'input window, operand 3, single buffered']
    #allocation8 [shape = 's32[1]{0}', space=sflag, size = 0x4, scoped, tag = 'scoped memory for generator_forward.1']
    #allocation9 [shape = 'u8[8192]{0}', space=vmem, size = 0x2000, scoped, tag = 'input window, operand 6, single buffered']
    #allocation11 [shape = 'u32[9]{0}', space=smem, size = 0x24, scoped, tag = 'DMA stride descriptor']
    %12 = vsyncpa [#allocation6], 0
    %13 = vsyncpa [#allocation8], 0
    // Predicated region
    $region2: #{generator_forward.1} parent=1 // pred_check
      _
    $region3: #{generator_forward.1} parent=1 // pred_check_branch
      %15 = sbr.rel (0) target = $region5
    $region4: #{generator_forward.1} parent=1 // pred_region
      _
    $region5: #{generator_forward.1} parent=1 // pred_fallthru
      _
    // Predicated region
    $region6: #{generator_forward.1} parent=1 // pred_check
      _
    $region7: #{generator_forward.1} parent=1 // pred_check_branch
      %17 = sbr.rel (0) target = $region9
    $region8: #{generator_forward.1} parent=1 // pred_region
      _
    $region9: #{generator_forward.1} parent=1 // pred_fallthru
      _
    // Predicated region
    $region10: #{generator_forward.1} parent=1 // pred_check
      _
    $region11: #{generator_forward.1} parent=1 // pred_check_branch
      %19 = sbr.rel (0) target = $region13
    $region12: #{generator_forward.1} parent=1 // pred_region
      %s21 = ssub.s32 2048, 2048
      %22 = vsyncadd [#allocation6], %s21
      %s23 = sshll.u32 [#allocation5], 4
      %s24 = int_to_ptr.vmem [resolvable:$true] %s23
      %29 = dma.hbm_to_vmem [thread:$0]  %s2, 2048, %s24, [#allocation6], 128, 128, 8
    $region13: #{generator_forward.1} parent=1 // pred_fallthru
      _
    // Predicated region
    $region14: #{generator_forward.1} parent=1 // pred_check
      _
    $region15: #{generator_forward.1} parent=1 // pred_check_branch
      %31 = sbr.rel (0) target = $region17
    $region16: #{generator_forward.1} parent=1 // pred_region
      %s33 = ssub.s32 8192, 8192
      %34 = vsyncadd [#allocation8], %s33
      %s35 = sshll.u32 [#allocation7], 4
      %s36 = int_to_ptr.vmem [resolvable:$true] %s35
      %41 = dma.hbm_to_vmem [thread:$0]  %s3, 8192, %s36, [#allocation8], 256, 256, 16
    $region17: #{generator_forward.1} parent=1 // pred_fallthru
      _
    // Predicated region
    $region18: #{generator_forward.1} parent=1 // pred_check
      _
    $region19: #{generator_forward.1} parent=1 // pred_check_branch
      %43 = sbr.rel (0) target = $region21
    $region20: #{generator_forward.1} parent=1 // pred_region
      %s45 = ssub.s32 256, 256
      %46 = vsyncadd [#allocation8], %s45
      %s48 = sshll.u32 [#allocation9], 4
      %s49 = int_to_ptr.vmem [resolvable:$true] %s48
      %51 = dma.hbm_to_vmem [thread:$0]  %s6, 256, %s49, [#allocation8]
    $region21: #{generator_forward.1} parent=1 // pred_fallthru
      _
    // Predicated region
    $region22: #{generator_forward.1} parent=1 // pred_check
      _
    $region23: #{generator_forward.1} parent=1 // pred_check_branch
      %53 = sbr.rel (0) target = $region25
    $region24: #{generator_forward.1} parent=1 // pred_region
      %54 = dma.done [#allocation6], 2048
    $region25: #{generator_forward.1} parent=1 // pred_fallthru
      _
    // Predicated region
    $region26: #{generator_forward.1} parent=1 // pred_check
      _
    $region27: #{generator_forward.1} parent=1 // pred_check_branch
      %56 = sbr.rel (0) target = $region29
    $region28: #{generator_forward.1} parent=1 // pred_region
      %57 = dma.done [#allocation8], 8192
    $region29: #{generator_forward.1} parent=1 // pred_fallthru
      _
    // Predicated region
    $region30: #{generator_forward.1} parent=1 // pred_check
      _
    $region31: #{generator_forward.1} parent=1 // pred_check_branch
      %59 = sbr.rel (0) target = $region33
    $region32: #{generator_forward.1} parent=1 // pred_region
      %60 = dma.done [#allocation8], 256
    $region33: #{generator_forward.1} parent=1 // pred_fallthru
      _
    %s63 = sshll.u32 1, 14
    %s64 = sxor.u32 4294967295, %s63
    %s66 = sld [smem:[#allocation0]]
    %s67 = sadd.s32 2, %s66
    %s69 = sshll.u32 7, 26
    %s70 = sxor.u32 4294967295, %s69
    %s71 = sand.u32 0, %s70
    %s72 = sshll.u32 %s67, 26
    %s73 = sor.u32 %s71, %s72
    %s74 = sshll.u32 [#allocation2], 4
    %s75 = int_to_ptr.vmem [resolvable:$true] %s74
    %78 = sst [smem:[#allocation11]] 1024
    %s79 = scalar_lea.smem [#allocation11], 1
    %80 = sst [smem:[%s79]] 1024
    %s81 = scalar_lea.smem [#allocation11], 2
    %82 = sst [smem:[%s81]] 8
    %s83 = scalar_lea.smem [#allocation11], 3
    %84 = sst [smem:[%s83]] 64
    %s85 = scalar_lea.smem [#allocation11], 4
    %86 = sst [smem:[%s85]] 128
    %s87 = scalar_lea.smem [#allocation11], 5
    %88 = sst [smem:[%s87]] 2
    %s89 = scalar_lea.smem [#allocation11], 6
    %90 = sst [smem:[%s89]] 512
    %s91 = scalar_lea.smem [#allocation11], 7
    %92 = sst [smem:[%s91]] 64
    %s93 = scalar_lea.smem [#allocation11], 8
    %94 = sst [smem:[%s93]] 4
    %96 = dma.general %s4, 32768, %s75, [#allocation4], [#allocation10], [#allocation11], %s73, 0
    %s97 = scalar_lea.sflag [#allocation4], 1
    // Predicated region
    $region34: #{generator_forward.1} parent=1 // pred_check
      _
    $region35: #{generator_forward.1} parent=1 // pred_check_branch
      %99 = sbr.rel target = $region37
    $region36: #{generator_forward.1} parent=1 // pred_region
      %100 = sst [smem:[#allocation14]] [#allocation13]
      %101 = sst [smem:[#allocation15]] [#allocation12]
    $region37: #{generator_forward.1} parent=1 // pred_fallthru
      _
    %103 = shalt.err (0)
    %s105 = sshll.u32 [#allocation3], 4
    %s106 = int_to_ptr.vmem [resolvable:$true] %s105
    %108 = dma.hbm_to_vmem [thread:$0]  %s5, 8192, %s106, %s97
    %v109 = vld [vmem:[%s0] sm:$0xf]
    %v110 = vld [vmem:[%s0 + $0x4] sm:$0xf]
    %v111 = vld [vmem:[%s1] sm:$0xf]
    %v112 = vld [vmem:[%s1 + $0x4] sm:$0xf]
    %v113 = vld [vmem:[%s1 + $0x8] sm:$0xf]
    %v114 = vld [vmem:[%s1 + $0xc] sm:$0xf]
    %v115 = vld [vmem:[#allocation9] sm:$0x1]
    %v117 = vlaneseq
    %v118 = vshrl.u32 %v117, 7
    %v119 = vsub.s32 0, %v118
    %v120 = vrot.slane %v115, %v119
    %v124 = vunpack.c.l.b16 %v109
    %v125 = vunpack.c.l.b16 %v110
    %v126 = vpack.c.b16 %v125, %v124
    %v131 = vunpack.c.l.b16 %v111
    %v132 = vunpack.c.l.b16 %v112
    %v133 = vunpack.c.l.b16 %v113
    %v134 = vunpack.c.l.b16 %v114
    %v135 = vpack.c.b16 %v132, %v131
    %v136 = vpack.c.b16 %v134, %v133
    %vm139 = vcmask 261120
    %v141 = vsel %vm139, %v126, 0
    %143 = vmatprep.subr.bf16.mxu0 0
    %144 = vmatpush1.bf16.msra.mxu0 %v135
    %145 = vmatprep.subr.bf16.mxu0 0
    %146 = vmatpush1.bf16.msra.mxu0 %v136
    %147 = vmatprep.subr.bf16.mxu0 0
    %148 = vmatpush1.bf16.msra.mxu0 0
    %149 = vmatprep.subr.bf16.mxu0 0
    %150 = vmatpush1.bf16.msra.mxu0 0
    %151 = vmatprep.subr.bf16.mxu0 0
    %152 = vmatpush1.bf16.msra.mxu0 0
    %153 = vmatprep.subr.bf16.mxu0 0
    %154 = vmatpush1.bf16.msra.mxu0 0
    %155 = vmatprep.subr.bf16.mxu0 0
    %156 = vmatpush1.bf16.msra.mxu0 0
    %157 = vmatprep.subr.bf16.mxu0 0
    %158 = vmatpush1.bf16.msra.mxu0 0
    %159 = vmatprep.subr.bf16.mxu0 0
    %160 = vmatpush1.bf16.msra.mxu0 0
    %161 = vmatprep.subr.bf16.mxu0 0
    %162 = vmatpush1.bf16.msra.mxu0 0
    %163 = vmatprep.subr.bf16.mxu0 0
    %164 = vmatpush1.bf16.msra.mxu0 0
    %165 = vmatprep.subr.bf16.mxu0 0
    %166 = vmatpush1.bf16.msra.mxu0 0
    %167 = vmatprep.subr.bf16.mxu0 0
    %168 = vmatpush1.bf16.msra.mxu0 0
    %169 = vmatprep.subr.bf16.mxu0 0
    %170 = vmatpush1.bf16.msra.mxu0 0
    %171 = vmatprep.subr.bf16.mxu0 0
    %172 = vmatpush1.bf16.msra.mxu0 0
    %173 = vmatprep.subr.bf16.mxu0 0
    %174 = vmatpush1.bf16.msra.mxu0 0
    %175 = vmatprep.mubr.bf16.mxu0 0
    %176 = vmatmul.mubr.bf16.gmra.mrb[0].mxu0 %v141
    %v177 = vpop.f32.mrb[0].mxu0
    %v178 = vadd.f32 %v120, %v177
    %v179 = vpop.f32.mrb[0].mxu0
    %v180 = vpop.f32.mrb[0].mxu0
    %v181 = vadd.f32 %v120, %v180
    %v182 = vpop.f32.mrb[0].mxu0
    %183 = vdwg.mxu0
    %v184 = vmul.f32 %v178, 0.2
    %v185 = vmul.f32 %v181, 0.2
    %v186 = vmax.f32 %v178, %v184
    %v187 = vmax.f32 %v181, %v185
    %v188 = vld [vmem:[#allocation5] sm:$0xff]
    %v189 = vld [vmem:[#allocation5 + $0x8] sm:$0xff]
    %v190 = vld [vmem:[#allocation5 + $0x10] sm:$0xff]
    %v191 = vld [vmem:[#allocation5 + $0x18] sm:$0xff]
    %v192 = vld [vmem:[#allocation5 + $0x20] sm:$0xff]
    %v193 = vld [vmem:[#allocation5 + $0x28] sm:$0xff]
    %v194 = vld [vmem:[#allocation5 + $0x30] sm:$0xff]
    %v195 = vld [vmem:[#allocation5 + $0x38] sm:$0xff]
    %v196 = vld [vmem:[#allocation5 + $0x40] sm:$0xff]
    %v197 = vld [vmem:[#allocation5 + $0x48] sm:$0xff]
    %v198 = vld [vmem:[#allocation5 + $0x50] sm:$0xff]
    %v199 = vld [vmem:[#allocation5 + $0x58] sm:$0xff]
    %v200 = vld [vmem:[#allocation5 + $0x60] sm:$0xff]
    %v201 = vld [vmem:[#allocation5 + $0x68] sm:$0xff]
    %v202 = vld [vmem:[#allocation5 + $0x70] sm:$0xff]
    %v203 = vld [vmem:[#allocation5 + $0x78] sm:$0xff]
    %v204 = vpack.c.bf16 %v187, %v186
    %v205 = vld [vmem:[#allocation9 + $0x1] sm:$0x3]
    %v207 = vlaneseq
    %v208 = vshrl.u32 %v207, 7
    %v209 = vsub.s32 0, %v208
    %v210 = vrot.slane %v205, %v209
    %v211 = vlaneseq
    %v212 = vshrl.u32 %v211, 7
    %v213 = vsub.s32 1, %v212
    %v214 = vrot.slane %v205, %v213
    %v233 = vunpack.c.l.b16 %v188
    %v234 = vunpack.c.h.b16 %v188
    %v235 = vunpack.c.l.b16 %v189
    %v236 = vunpack.c.h.b16 %v189
    %v237 = vunpack.c.l.b16 %v190
    %v238 = vunpack.c.h.b16 %v190
    %v239 = vunpack.c.l.b16 %v191
    %v240 = vunpack.c.h.b16 %v191
    %v241 = vunpack.c.l.b16 %v192
    %v242 = vunpack.c.h.b16 %v192
    %v243 = vunpack.c.l.b16 %v193
    %v244 = vunpack.c.h.b16 %v193
    %v245 = vunpack.c.l.b16 %v194
    %v246 = vunpack.c.h.b16 %v194
    %v247 = vunpack.c.l.b16 %v195
    %v248 = vunpack.c.h.b16 %v195
    %v249 = vunpack.c.l.b16 %v196
    %v250 = vunpack.c.h.b16 %v196
    %v251 = vunpack.c.l.b16 %v197
    %v252 = vunpack.c.h.b16 %v197
    %v253 = vunpack.c.l.b16 %v198
    %v254 = vunpack.c.h.b16 %v198
    %v255 = vunpack.c.l.b16 %v199
    %v256 = vunpack.c.h.b16 %v199
    %v257 = vunpack.c.l.b16 %v200
    %v258 = vunpack.c.h.b16 %v200
    %v259 = vunpack.c.l.b16 %v201
    %v260 = vunpack.c.h.b16 %v201
    %v261 = vunpack.c.l.b16 %v202
    %v262 = vunpack.c.h.b16 %v202
    %v263 = vunpack.c.l.b16 %v203
    %v264 = vunpack.c.h.b16 %v203
    %v265 = vpack.c.b16 %v235, %v233
    %v266 = vpack.c.b16 %v236, %v234
    %v267 = vpack.c.b16 %v239, %v237
    %v268 = vpack.c.b16 %v240, %v238
    %v269 = vpack.c.b16 %v243, %v241
    %v270 = vpack.c.b16 %v244, %v242
    %v271 = vpack.c.b16 %v247, %v245
    %v272 = vpack.c.b16 %v248, %v246
    %v273 = vpack.c.b16 %v251, %v249
    %v274 = vpack.c.b16 %v252, %v250
    %v275 = vpack.c.b16 %v255, %v253
    %v276 = vpack.c.b16 %v256, %v254
    %v277 = vpack.c.b16 %v259, %v257
    %v278 = vpack.c.b16 %v260, %v258
    %v279 = vpack.c.b16 %v263, %v261
    %v280 = vpack.c.b16 %v264, %v262
    %297 = vmatprep.subr.bf16.mxu0 %v266
    %298 = vmatpush1.bf16.msra.mxu0 %v265
    %299 = vmatprep.subr.bf16.mxu0 %v268
    %300 = vmatpush1.bf16.msra.mxu0 %v267
    %301 = vmatprep.subr.bf16.mxu0 %v270
    %302 = vmatpush1.bf16.msra.mxu0 %v269
    %303 = vmatprep.subr.bf16.mxu0 %v272
    %304 = vmatpush1.bf16.msra.mxu0 %v271
    %305 = vmatprep.subr.bf16.mxu0 %v274
    %306 = vmatpush1.bf16.msra.mxu0 %v273
    %307 = vmatprep.subr.bf16.mxu0 %v276
    %308 = vmatpush1.bf16.msra.mxu0 %v275
    %309 = vmatprep.subr.bf16.mxu0 %v278
    %310 = vmatpush1.bf16.msra.mxu0 %v277
    %311 = vmatprep.subr.bf16.mxu0 %v280
    %312 = vmatpush1.bf16.msra.mxu0 %v279
    %313 = vmatprep.subr.bf16.mxu0 0
    %314 = vmatpush1.bf16.msra.mxu0 0
    %315 = vmatprep.subr.bf16.mxu0 0
    %316 = vmatpush1.bf16.msra.mxu0 0
    %317 = vmatprep.subr.bf16.mxu0 0
    %318 = vmatpush1.bf16.msra.mxu0 0
    %319 = vmatprep.subr.bf16.mxu0 0
    %320 = vmatpush1.bf16.msra.mxu0 0
    %321 = vmatprep.subr.bf16.mxu0 0
    %322 = vmatpush1.bf16.msra.mxu0 0
    %323 = vmatprep.subr.bf16.mxu0 0
    %324 = vmatpush1.bf16.msra.mxu0 0
    %325 = vmatprep.subr.bf16.mxu0 0
    %326 = vmatpush1.bf16.msra.mxu0 0
    %327 = vmatprep.subr.bf16.mxu0 0
    %328 = vmatpush1.bf16.msra.mxu0 0
    %329 = vmatprep.mubr.bf16.mxu0 0
    %330 = vmatmul.mubr.bf16.gmra.mrb[0].mxu0 %v204
    %v331 = vpop.f32.mrb[0].mxu0
    %v332 = vadd.f32 %v210, %v331
    %v333 = vpop.f32.mrb[0].mxu0
    %v334 = vadd.f32 %v214, %v333
    %v335 = vpop.f32.mrb[0].mxu0
    %v336 = vadd.f32 %v210, %v335
    %v337 = vpop.f32.mrb[0].mxu0
    %v338 = vadd.f32 %v214, %v337
    %339 = vdwg.mxu0
    %v340 = vadd.f32 %v332, %v336
    %v341 = vrot.slane %v340, 4
    %v342 = vadd.f32 %v340, %v341
    %v343 = vrot.slane %v342, 2
    %v344 = vadd.f32 %v342, %v343
    %v345 = vrot.slane %v344, 1
    %v346 = vadd.f32 %v344, %v345
    %v347 = vadd.f32 %v334, %v338
    %v348 = vrot.slane %v347, 4
    %v349 = vadd.f32 %v347, %v348
    %v350 = vrot.slane %v349, 2
    %v351 = vadd.f32 %v349, %v350
    %v352 = vrot.slane %v351, 1
    %v353 = vadd.f32 %v351, %v352
    %v354 = vrcp.pop 16.0
    %v355 = vmul.f32 %v346, %v354
    %v356 = vmul.f32 %v353, %v354
    %v357 = vsub.f32 %v332, %v355
    %v358 = vsub.f32 %v334, %v356
    %v359 = vsub.f32 %v336, %v355
    %v360 = vsub.f32 %v338, %v356
    %v361 = vmul.f32 %v357, %v357
    %v362 = vmul.f32 %v358, %v358
    %v363 = vmul.f32 %v359, %v359
    %v364 = vmul.f32 %v360, %v360
    %v365 = vadd.f32 %v361, %v363
    %v366 = vrot.slane %v365, 4
    %v367 = vadd.f32 %v365, %v366
    %v368 = vrot.slane %v367, 2
    %v369 = vadd.f32 %v367, %v368
    %v370 = vrot.slane %v369, 1
    %v371 = vadd.f32 %v369, %v370
    %v372 = vadd.f32 %v362, %v364
    %v373 = vrot.slane %v372, 4
    %v374 = vadd.f32 %v372, %v373
    %v375 = vrot.slane %v374, 2
    %v376 = vadd.f32 %v374, %v375
    %v377 = vrot.slane %v376, 1
    %v378 = vadd.f32 %v376, %v377
    %v379 = vmul.f32 %v371, %v354
    %v380 = vmul.f32 %v378, %v354
    %v381 = vadd.f32 %v379, 0.8
    %v382 = vadd.f32 %v380, 0.8
    %v383 = vrsqrt.pop %v381
    %v384 = vrsqrt.pop %v382
    %v385 = vmul.f32 %v357, %v383
    %v386 = vmul.f32 %v358, %v384
    %v387 = vmul.f32 %v359, %v383
    %v388 = vmul.f32 %v360, %v384
    %v389 = vmul.f32 %v385, 0.2
    %v390 = vmul.f32 %v386, 0.2
    %v391 = vmul.f32 %v387, 0.2
    %v392 = vmul.f32 %v388, 0.2
    %v393 = vmax.f32 %v385, %v389
    %v394 = vmax.f32 %v386, %v390
    %v395 = vmax.f32 %v387, %v391
    %v396 = vmax.f32 %v388, %v392
    %v397 = vld [vmem:[#allocation7] sm:$0xff]
    %v398 = vld [vmem:[#allocation7 + $0x8] sm:$0xff]
    %v399 = vld [vmem:[#allocation7 + $0x10] sm:$0xff]
    %v400 = vld [vmem:[#allocation7 + $0x18] sm:$0xff]
    %v401 = vld [vmem:[#allocation7 + $0x20] sm:$0xff]
    %v402 = vld [vmem:[#allocation7 + $0x28] sm:$0xff]
    %v403 = vld [vmem:[#allocation7 + $0x30] sm:$0xff]
    %v404 = vld [vmem:[#allocation7 + $0x38] sm:$0xff]
    %v405 = vld [vmem:[#allocation7 + $0x40] sm:$0xff]
    %v406 = vld [vmem:[#allocation7 + $0x48] sm:$0xff]
    %v407 = vld [vmem:[#allocation7 + $0x50] sm:$0xff]
    %v408 = vld [vmem:[#allocation7 + $0x58] sm:$0xff]
    %v409 = vld [vmem:[#allocation7 + $0x60] sm:$0xff]
    %v410 = vld [vmem:[#allocation7 + $0x68] sm:$0xff]
    %v411 = vld [vmem:[#allocation7 + $0x70] sm:$0xff]
    %v412 = vld [vmem:[#allocation7 + $0x78] sm:$0xff]
    %v413 = vld [vmem:[#allocation7 + $0x80] sm:$0xff]
    %v414 = vld [vmem:[#allocation7 + $0x88] sm:$0xff]
    %v415 = vld [vmem:[#allocation7 + $0x90] sm:$0xff]
    %v416 = vld [vmem:[#allocation7 + $0x98] sm:$0xff]
    %v417 = vld [vmem:[#allocation7 + $0xa0] sm:$0xff]
    %v418 = vld [vmem:[#allocation7 + $0xa8] sm:$0xff]
    %v419 = vld [vmem:[#allocation7 + $0xb0] sm:$0xff]
    %v420 = vld [vmem:[#allocation7 + $0xb8] sm:$0xff]
    %v421 = vld [vmem:[#allocation7 + $0xc0] sm:$0xff]
    %v422 = vld [vmem:[#allocation7 + $0xc8] sm:$0xff]
    %v423 = vld [vmem:[#allocation7 + $0xd0] sm:$0xff]
    %v424 = vld [vmem:[#allocation7 + $0xd8] sm:$0xff]
    %v425 = vld [vmem:[#allocation7 + $0xe0] sm:$0xff]
    %v426 = vld [vmem:[#allocation7 + $0xe8] sm:$0xff]
    %v427 = vld [vmem:[#allocation7 + $0xf0] sm:$0xff]
    %v428 = vld [vmem:[#allocation7 + $0xf8] sm:$0xff]
    %v429 = vld [vmem:[#allocation7 + $0x100] sm:$0xff]
    %v430 = vld [vmem:[#allocation7 + $0x108] sm:$0xff]
    %v431 = vld [vmem:[#allocation7 + $0x110] sm:$0xff]
    %v432 = vld [vmem:[#allocation7 + $0x118] sm:$0xff]
    %v433 = vld [vmem:[#allocation7 + $0x120] sm:$0xff]
    %v434 = vld [vmem:[#allocation7 + $0x128] sm:$0xff]
    %v435 = vld [vmem:[#allocation7 + $0x130] sm:$0xff]
    %v436 = vld [vmem:[#allocation7 + $0x138] sm:$0xff]
    %v437 = vld [vmem:[#allocation7 + $0x140] sm:$0xff]
    %v438 = vld [vmem:[#allocation7 + $0x148] sm:$0xff]
    %v439 = vld [vmem:[#allocation7 + $0x150] sm:$0xff]
    %v440 = vld [vmem:[#allocation7 + $0x158] sm:$0xff]
    %v441 = vld [vmem:[#allocation7 + $0x160] sm:$0xff]
    %v442 = vld [vmem:[#allocation7 + $0x168] sm:$0xff]
    %v443 = vld [vmem:[#allocation7 + $0x170] sm:$0xff]
    %v444 = vld [vmem:[#allocation7 + $0x178] sm:$0xff]
    %v445 = vld [vmem:[#allocation7 + $0x180] sm:$0xff]
    %v446 = vld [vmem:[#allocation7 + $0x188] sm:$0xff]
    %v447 = vld [vmem:[#allocation7 + $0x190] sm:$0xff]
    %v448 = vld [vmem:[#allocation7 + $0x198] sm:$0xff]
    %v449 = vld [vmem:[#allocation7 + $0x1a0] sm:$0xff]
    %v450 = vld [vmem:[#allocation7 + $0x1a8] sm:$0xff]
    %v451 = vld [vmem:[#allocation7 + $0x1b0] sm:$0xff]
    %v452 = vld [vmem:[#allocation7 + $0x1b8] sm:$0xff]
    %v453 = vld [vmem:[#allocation7 + $0x1c0] sm:$0xff]
    %v454 = vld [vmem:[#allocation7 + $0x1c8] sm:$0xff]
    %v455 = vld [vmem:[#allocation7 + $0x1d0] sm:$0xff]
    %v456 = vld [vmem:[#allocation7 + $0x1d8] sm:$0xff]
    %v457 = vld [vmem:[#allocation7 + $0x1e0] sm:$0xff]
    %v458 = vld [vmem:[#allocation7 + $0x1e8] sm:$0xff]
    %v459 = vld [vmem:[#allocation7 + $0x1f0] sm:$0xff]
    %v460 = vld [vmem:[#allocation7 + $0x1f8] sm:$0xff]
    %v461 = vpack.c.bf16 %v395, %v393
    %v462 = vpack.c.bf16 %v396, %v394
    %v463 = vld [vmem:[#allocation9 + $0x3] sm:$0xf]
    %v465 = vlaneseq
    %v466 = vshrl.u32 %v465, 7
    %v467 = vsub.s32 0, %v466
    %v468 = vrot.slane %v463, %v467
    %v469 = vlaneseq
    %v470 = vshrl.u32 %v469, 7
    %v471 = vsub.s32 1, %v470
    %v472 = vrot.slane %v463, %v471
    %v473 = vlaneseq
    %v474 = vshrl.u32 %v473, 7
    %v475 = vsub.s32 2, %v474
    %v476 = vrot.slane %v463, %v475
    %v477 = vlaneseq
    %v478 = vshrl.u32 %v477, 7
    %v479 = vsub.s32 3, %v478
    %v480 = vrot.slane %v463, %v479
    %v549 = vunpack.c.l.b16 %v397
    %v550 = vunpack.c.h.b16 %v397
    %v551 = vunpack.c.l.b16 %v398
    %v552 = vunpack.c.h.b16 %v398
    %v553 = vunpack.c.l.b16 %v399
    %v554 = vunpack.c.h.b16 %v399
    %v555 = vunpack.c.l.b16 %v400
    %v556 = vunpack.c.h.b16 %v400
    %v557 = vunpack.c.l.b16 %v401
    %v558 = vunpack.c.h.b16 %v401
    %v559 = vunpack.c.l.b16 %v402
    %v560 = vunpack.c.h.b16 %v402
    %v561 = vunpack.c.l.b16 %v403
    %v562 = vunpack.c.h.b16 %v403
    %v563 = vunpack.c.l.b16 %v404
    %v564 = vunpack.c.h.b16 %v404
    %v565 = vunpack.c.l.b16 %v405
    %v566 = vunpack.c.h.b16 %v405
    %v567 = vunpack.c.l.b16 %v406
    %v568 = vunpack.c.h.b16 %v406
    %v569 = vunpack.c.l.b16 %v407
    %v570 = vunpack.c.h.b16 %v407
    %v571 = vunpack.c.l.b16 %v408
    %v572 = vunpack.c.h.b16 %v408
    %v573 = vunpack.c.l.b16 %v409
    %v574 = vunpack.c.h.b16 %v409
    %v575 = vunpack.c.l.b16 %v410
    %v576 = vunpack.c.h.b16 %v410
    %v577 = vunpack.c.l.b16 %v411
    %v578 = vunpack.c.h.b16 %v411
    %v579 = vunpack.c.l.b16 %v412
    %v580 = vunpack.c.h.b16 %v412
    %v581 = vunpack.c.l.b16 %v413
    %v582 = vunpack.c.h.b16 %v413
    %v583 = vunpack.c.l.b16 %v414
    %v584 = vunpack.c.h.b16 %v414
    %v585 = vunpack.c.l.b16 %v415
    %v586 = vunpack.c.h.b16 %v415
    %v587 = vunpack.c.l.b16 %v416
    %v588 = vunpack.c.h.b16 %v416
    %v589 = vunpack.c.l.b16 %v417
    %v590 = vunpack.c.h.b16 %v417
    %v591 = vunpack.c.l.b16 %v418
    %v592 = vunpack.c.h.b16 %v418
    %v593 = vunpack.c.l.b16 %v419
    %v594 = vunpack.c.h.b16 %v419
    %v595 = vunpack.c.l.b16 %v420
    %v596 = vunpack.c.h.b16 %v420
    %v597 = vunpack.c.l.b16 %v421
    %v598 = vunpack.c.h.b16 %v421
    %v599 = vunpack.c.l.b16 %v422
    %v600 = vunpack.c.h.b16 %v422
    %v601 = vunpack.c.l.b16 %v423
    %v602 = vunpack.c.h.b16 %v423
    %v603 = vunpack.c.l.b16 %v424
    %v604 = vunpack.c.h.b16 %v424
    %v605 = vunpack.c.l.b16 %v425
    %v606 = vunpack.c.h.b16 %v425
    %v607 = vunpack.c.l.b16 %v426
    %v608 = vunpack.c.h.b16 %v426
    %v609 = vunpack.c.l.b16 %v427
    %v610 = vunpack.c.h.b16 %v427
    %v611 = vunpack.c.l.b16 %v428
    %v612 = vunpack.c.h.b16 %v428
    %v613 = vunpack.c.l.b16 %v429
    %v614 = vunpack.c.h.b16 %v429
    %v615 = vunpack.c.l.b16 %v430
    %v616 = vunpack.c.h.b16 %v430
    %v617 = vunpack.c.l.b16 %v431
    %v618 = vunpack.c.h.b16 %v431
    %v619 = vunpack.c.l.b16 %v432
    %v620 = vunpack.c.h.b16 %v432
    %v621 = vunpack.c.l.b16 %v433
    %v622 = vunpack.c.h.b16 %v433
    %v623 = vunpack.c.l.b16 %v434
    %v624 = vunpack.c.h.b16 %v434
    %v625 = vunpack.c.l.b16 %v435
    %v626 = vunpack.c.h.b16 %v435
    %v627 = vunpack.c.l.b16 %v436
    %v628 = vunpack.c.h.b16 %v436
    %v629 = vunpack.c.l.b16 %v437
    %v630 = vunpack.c.h.b16 %v437
    %v631 = vunpack.c.l.b16 %v438
    %v632 = vunpack.c.h.b16 %v438
    %v633 = vunpack.c.l.b16 %v439
    %v634 = vunpack.c.h.b16 %v439
    %v635 = vunpack.c.l.b16 %v440
    %v636 = vunpack.c.h.b16 %v440
    %v637 = vunpack.c.l.b16 %v441
    %v638 = vunpack.c.h.b16 %v441
    %v639 = vunpack.c.l.b16 %v442
    %v640 = vunpack.c.h.b16 %v442
    %v641 = vunpack.c.l.b16 %v443
    %v642 = vunpack.c.h.b16 %v443
    %v643 = vunpack.c.l.b16 %v444
    %v644 = vunpack.c.h.b16 %v444
    %v645 = vunpack.c.l.b16 %v445
    %v646 = vunpack.c.h.b16 %v445
    %v647 = vunpack.c.l.b16 %v446
    %v648 = vunpack.c.h.b16 %v446
    %v649 = vunpack.c.l.b16 %v447
    %v650 = vunpack.c.h.b16 %v447
    %v651 = vunpack.c.l.b16 %v448
    %v652 = vunpack.c.h.b16 %v448
    %v653 = vunpack.c.l.b16 %v449
    %v654 = vunpack.c.h.b16 %v449
    %v655 = vunpack.c.l.b16 %v450
    %v656 = vunpack.c.h.b16 %v450
    %v657 = vunpack.c.l.b16 %v451
    %v658 = vunpack.c.h.b16 %v451
    %v659 = vunpack.c.l.b16 %v452
    %v660 = vunpack.c.h.b16 %v452
    %v661 = vunpack.c.l.b16 %v453
    %v662 = vunpack.c.h.b16 %v453
    %v663 = vunpack.c.l.b16 %v454
    %v664 = vunpack.c.h.b16 %v454
    %v665 = vunpack.c.l.b16 %v455
    %v666 = vunpack.c.h.b16 %v455
    %v667 = vunpack.c.l.b16 %v456
    %v668 = vunpack.c.h.b16 %v456
    %v669 = vunpack.c.l.b16 %v457
    %v670 = vunpack.c.h.b16 %v457
    %v671 = vunpack.c.l.b16 %v458
    %v672 = vunpack.c.h.b16 %v458
    %v673 = vunpack.c.l.b16 %v459
    %v674 = vunpack.c.h.b16 %v459
    %v675 = vunpack.c.l.b16 %v460
    %v676 = vunpack.c.h.b16 %v460
    %v677 = vpack.c.b16 %v553, %v549
    %v678 = vpack.c.b16 %v554, %v550
    %v679 = vpack.c.b16 %v555, %v551
    %v680 = vpack.c.b16 %v556, %v552
    %v681 = vpack.c.b16 %v561, %v557
    %v682 = vpack.c.b16 %v562, %v558
    %v683 = vpack.c.b16 %v563, %v559
    %v684 = vpack.c.b16 %v564, %v560
    %v685 = vpack.c.b16 %v569, %v565
    %v686 = vpack.c.b16 %v570, %v566
    %v687 = vpack.c.b16 %v571, %v567
    %v688 = vpack.c.b16 %v572, %v568
    %v689 = vpack.c.b16 %v577, %v573
    %v690 = vpack.c.b16 %v578, %v574
    %v691 = vpack.c.b16 %v579, %v575
    %v692 = vpack.c.b16 %v580, %v576
    %v693 = vpack.c.b16 %v585, %v581
    %v694 = vpack.c.b16 %v586, %v582
    %v695 = vpack.c.b16 %v587, %v583
    %v696 = vpack.c.b16 %v588, %v584
    %v697 = vpack.c.b16 %v593, %v589
    %v698 = vpack.c.b16 %v594, %v590
    %v699 = vpack.c.b16 %v595, %v591
    %v700 = vpack.c.b16 %v596, %v592
    %v701 = vpack.c.b16 %v601, %v597
    %v702 = vpack.c.b16 %v602, %v598
    %v703 = vpack.c.b16 %v603, %v599
    %v704 = vpack.c.b16 %v604, %v600
    %v705 = vpack.c.b16 %v609, %v605
    %v706 = vpack.c.b16 %v610, %v606
    %v707 = vpack.c.b16 %v611, %v607
    %v708 = vpack.c.b16 %v612, %v608
    %v709 = vpack.c.b16 %v617, %v613
    %v710 = vpack.c.b16 %v618, %v614
    %v711 = vpack.c.b16 %v619, %v615
    %v712 = vpack.c.b16 %v620, %v616
    %v713 = vpack.c.b16 %v625, %v621
    %v714 = vpack.c.b16 %v626, %v622
    %v715 = vpack.c.b16 %v627, %v623
    %v716 = vpack.c.b16 %v628, %v624
    %v717 = vpack.c.b16 %v633, %v629
    %v718 = vpack.c.b16 %v634, %v630
    %v719 = vpack.c.b16 %v635, %v631
    %v720 = vpack.c.b16 %v636, %v632
    %v721 = vpack.c.b16 %v641, %v637
    %v722 = vpack.c.b16 %v642, %v638
    %v723 = vpack.c.b16 %v643, %v639
    %v724 = vpack.c.b16 %v644, %v640
    %v725 = vpack.c.b16 %v649, %v645
    %v726 = vpack.c.b16 %v650, %v646
    %v727 = vpack.c.b16 %v651, %v647
    %v728 = vpack.c.b16 %v652, %v648
    %v729 = vpack.c.b16 %v657, %v653
    %v730 = vpack.c.b16 %v658, %v654
    %v731 = vpack.c.b16 %v659, %v655
    %v732 = vpack.c.b16 %v660, %v656
    %v733 = vpack.c.b16 %v665, %v661
    %v734 = vpack.c.b16 %v666, %v662
    %v735 = vpack.c.b16 %v667, %v663
    %v736 = vpack.c.b16 %v668, %v664
    %v737 = vpack.c.b16 %v673, %v669
    %v738 = vpack.c.b16 %v674, %v670
    %v739 = vpack.c.b16 %v675, %v671
    %v740 = vpack.c.b16 %v676, %v672
    %805 = vmatprep.subr.bf16.mxu0 %v678
    %806 = vmatpush1.bf16.msra.mxu0 %v677
    %807 = vmatprep.subr.bf16.mxu0 %v682
    %808 = vmatpush1.bf16.msra.mxu0 %v681
    %809 = vmatprep.subr.bf16.mxu0 %v686
    %810 = vmatpush1.bf16.msra.mxu0 %v685
    %811 = vmatprep.subr.bf16.mxu0 %v690
    %812 = vmatpush1.bf16.msra.mxu0 %v689
    %813 = vmatprep.subr.bf16.mxu0 %v694
    %814 = vmatpush1.bf16.msra.mxu0 %v693
    %815 = vmatprep.subr.bf16.mxu0 %v698
    %816 = vmatpush1.bf16.msra.mxu0 %v697
    %817 = vmatprep.subr.bf16.mxu0 %v702
    %818 = vmatpush1.bf16.msra.mxu0 %v701
    %819 = vmatprep.subr.bf16.mxu0 %v706
    %820 = vmatpush1.bf16.msra.mxu0 %v705
    %821 = vmatprep.subr.bf16.mxu0 %v710
    %822 = vmatpush1.bf16.msra.mxu0 %v709
    %823 = vmatprep.subr.bf16.mxu0 %v714
    %824 = vmatpush1.bf16.msra.mxu0 %v713
    %825 = vmatprep.subr.bf16.mxu0 %v718
    %826 = vmatpush1.bf16.msra.mxu0 %v717
    %827 = vmatprep.subr.bf16.mxu0 %v722
    %828 = vmatpush1.bf16.msra.mxu0 %v721
    %829 = vmatprep.subr.bf16.mxu0 %v726
    %830 = vmatpush1.bf16.msra.mxu0 %v725
    %831 = vmatprep.subr.bf16.mxu0 %v730
    %832 = vmatpush1.bf16.msra.mxu0 %v729
    %833 = vmatprep.subr.bf16.mxu0 %v734
    %834 = vmatpush1.bf16.msra.mxu0 %v733
    %835 = vmatprep.subr.bf16.mxu0 %v738
    %836 = vmatpush1.bf16.msra.mxu0 %v737
    %837 = vmatprep.mubr.bf16.mxu0 %v462
    %838 = vmatmul.mubr.bf16.gmra.mrb[0].mxu0 %v461
    %v839 = vpop.f32.mrb[0].mxu0
    %v840 = vadd.f32 %v468, %v839
    %v841 = vpop.f32.mrb[0].mxu0
    %v842 = vadd.f32 %v472, %v841
    %v843 = vpop.f32.mrb[0].mxu0
    %v844 = vadd.f32 %v468, %v843
    %v845 = vpop.f32.mrb[0].mxu0
    %v846 = vadd.f32 %v472, %v845
    %847 = vdwg.mxu0
    %848 = vmatprep.subr.bf16.mxu0 %v680
    %849 = vmatpush1.bf16.msra.mxu0 %v679
    %850 = vmatprep.subr.bf16.mxu0 %v684
    %851 = vmatpush1.bf16.msra.mxu0 %v683
    %852 = vmatprep.subr.bf16.mxu0 %v688
    %853 = vmatpush1.bf16.msra.mxu0 %v687
    %854 = vmatprep.subr.bf16.mxu0 %v692
    %855 = vmatpush1.bf16.msra.mxu0 %v691
    %856 = vmatprep.subr.bf16.mxu0 %v696
    %857 = vmatpush1.bf16.msra.mxu0 %v695
    %858 = vmatprep.subr.bf16.mxu0 %v700
    %859 = vmatpush1.bf16.msra.mxu0 %v699
    %860 = vmatprep.subr.bf16.mxu0 %v704
    %861 = vmatpush1.bf16.msra.mxu0 %v703
    %862 = vmatprep.subr.bf16.mxu0 %v708
    %863 = vmatpush1.bf16.msra.mxu0 %v707
    %864 = vmatprep.subr.bf16.mxu0 %v712
    %865 = vmatpush1.bf16.msra.mxu0 %v711
    %866 = vmatprep.subr.bf16.mxu0 %v716
    %867 = vmatpush1.bf16.msra.mxu0 %v715
    %868 = vmatprep.subr.bf16.mxu0 %v720
    %869 = vmatpush1.bf16.msra.mxu0 %v719
    %870 = vmatprep.subr.bf16.mxu0 %v724
    %871 = vmatpush1.bf16.msra.mxu0 %v723
    %872 = vmatprep.subr.bf16.mxu0 %v728
    %873 = vmatpush1.bf16.msra.mxu0 %v727
    %874 = vmatprep.subr.bf16.mxu0 %v732
    %875 = vmatpush1.bf16.msra.mxu0 %v731
    %876 = vmatprep.subr.bf16.mxu0 %v736
    %877 = vmatpush1.bf16.msra.mxu0 %v735
    %878 = vmatprep.subr.bf16.mxu0 %v740
    %879 = vmatpush1.bf16.msra.mxu0 %v739
    %880 = vmatprep.mubr.bf16.mxu0 %v462
    %881 = vmatmul.mubr.bf16.gmra.mrb[0].mxu0 %v461
    %v882 = vpop.f32.mrb[0].mxu0
    %v883 = vadd.f32 %v476, %v882
    %v884 = vpop.f32.mrb[0].mxu0
    %v885 = vadd.f32 %v480, %v884
    %v886 = vpop.f32.mrb[0].mxu0
    %v887 = vadd.f32 %v476, %v886
    %v888 = vpop.f32.mrb[0].mxu0
    %v889 = vadd.f32 %v480, %v888
    %890 = vdwg.mxu0
    %v891 = vadd.f32 %v840, %v844
    %v892 = vrot.slane %v891, 4
    %v893 = vadd.f32 %v891, %v892
    %v894 = vrot.slane %v893, 2
    %v895 = vadd.f32 %v893, %v894
    %v896 = vrot.slane %v895, 1
    %v897 = vadd.f32 %v895, %v896
    %v898 = vadd.f32 %v842, %v846
    %v899 = vrot.slane %v898, 4
    %v900 = vadd.f32 %v898, %v899
    %v901 = vrot.slane %v900, 2
    %v902 = vadd.f32 %v900, %v901
    %v903 = vrot.slane %v902, 1
    %v904 = vadd.f32 %v902, %v903
    %v905 = vadd.f32 %v883, %v887
    %v906 = vrot.slane %v905, 4
    %v907 = vadd.f32 %v905, %v906
    %v908 = vrot.slane %v907, 2
    %v909 = vadd.f32 %v907, %v908
    %v910 = vrot.slane %v909, 1
    %v911 = vadd.f32 %v909, %v910
    %v912 = vadd.f32 %v885, %v889
    %v913 = vrot.slane %v912, 4
    %v914 = vadd.f32 %v912, %v913
    %v915 = vrot.slane %v914, 2
    %v916 = vadd.f32 %v914, %v915
    %v917 = vrot.slane %v916, 1
    %v918 = vadd.f32 %v916, %v917
    %v919 = vmul.f32 %v897, %v354
    %v920 = vmul.f32 %v904, %v354
    %v921 = vmul.f32 %v911, %v354
    %v922 = vmul.f32 %v918, %v354
    %v923 = vsub.f32 %v840, %v919
    %v924 = vsub.f32 %v842, %v920
    %v925 = vsub.f32 %v883, %v921
    %v926 = vsub.f32 %v885, %v922
    %v927 = vsub.f32 %v844, %v919
    %v928 = vsub.f32 %v846, %v920
    %v929 = vsub.f32 %v887, %v921
    %v930 = vsub.f32 %v889, %v922
    %v931 = vmul.f32 %v923, %v923
    %v932 = vmul.f32 %v924, %v924
    %v933 = vmul.f32 %v925, %v925
    %v934 = vmul.f32 %v926, %v926
    %v935 = vmul.f32 %v927, %v927
    %v936 = vmul.f32 %v928, %v928
    %v937 = vmul.f32 %v929, %v929
    %v938 = vmul.f32 %v930, %v930
    %v939 = vadd.f32 %v931, %v935
    %v940 = vrot.slane %v939, 4
    %v941 = vadd.f32 %v939, %v940
    %v942 = vrot.slane %v941, 2
    %v943 = vadd.f32 %v941, %v942
    %v944 = vrot.slane %v943, 1
    %v945 = vadd.f32 %v943, %v944
    %v946 = vadd.f32 %v932, %v936
    %v947 = vrot.slane %v946, 4
    %v948 = vadd.f32 %v946, %v947
    %v949 = vrot.slane %v948, 2
    %v950 = vadd.f32 %v948, %v949
    %v951 = vrot.slane %v950, 1
    %v952 = vadd.f32 %v950, %v951
    %v953 = vadd.f32 %v933, %v937
    %v954 = vrot.slane %v953, 4
    %v955 = vadd.f32 %v953, %v954
    %v956 = vrot.slane %v955, 2
    %v957 = vadd.f32 %v955, %v956
    %v958 = vrot.slane %v957, 1
    %v959 = vadd.f32 %v957, %v958
    %v960 = vadd.f32 %v934, %v938
    %v961 = vrot.slane %v960, 4
    %v962 = vadd.f32 %v960, %v961
    %v963 = vrot.slane %v962, 2
    %v964 = vadd.f32 %v962, %v963
    %v965 = vrot.slane %v964, 1
    %v966 = vadd.f32 %v964, %v965
    %v967 = vmul.f32 %v945, %v354
    %v968 = vmul.f32 %v952, %v354
    %v969 = vmul.f32 %v959, %v354
    %v970 = vmul.f32 %v966, %v354
    %v971 = vadd.f32 %v967, 0.8
    %v972 = vadd.f32 %v968, 0.8
    %v973 = vadd.f32 %v969, 0.8
    %v974 = vadd.f32 %v970, 0.8
    %v975 = vrsqrt.pop %v971
    %v976 = vrsqrt.pop %v972
    %v977 = vrsqrt.pop %v973
    %v978 = vrsqrt.pop %v974
    %v979 = vmul.f32 %v923, %v975
    %v980 = vmul.f32 %v924, %v976
    %v981 = vmul.f32 %v925, %v977
    %v982 = vmul.f32 %v926, %v978
    %v983 = vmul.f32 %v927, %v975
    %v984 = vmul.f32 %v928, %v976
    %v985 = vmul.f32 %v929, %v977
    %v986 = vmul.f32 %v930, %v978
    %v987 = vmul.f32 %v979, 0.2
    %v988 = vmul.f32 %v980, 0.2
    %v989 = vmul.f32 %v981, 0.2
    %v990 = vmul.f32 %v982, 0.2
    %v991 = vmul.f32 %v983, 0.2
    %v992 = vmul.f32 %v984, 0.2
    %v993 = vmul.f32 %v985, 0.2
    %v994 = vmul.f32 %v986, 0.2
    %v995 = vmax.f32 %v979, %v987
    %v996 = vmax.f32 %v980, %v988
    %v997 = vmax.f32 %v981, %v989
    %v998 = vmax.f32 %v982, %v990
    %v999 = vmax.f32 %v983, %v991
    %v1000 = vmax.f32 %v984, %v992
    %v1001 = vmax.f32 %v985, %v993
    %v1002 = vmax.f32 %v986, %v994
    %s1003 = smul.u32 4, 64
    %s1004 = smul.u32 %s1003, 8
    %s1005 = sshll.u32 %s1004, 4
    %1006 = dma.done [#allocation4], %s1005
    %v1007 = vld [vmem:[#allocation2] sm:$0xff]
    %v1008 = vld [vmem:[#allocation2 + $0x8] sm:$0xff]
    %v1009 = vld [vmem:[#allocation2 + $0x10] sm:$0xff]
    %v1010 = vld [vmem:[#allocation2 + $0x18] sm:$0xff]
    %v1011 = vld [vmem:[#allocation2 + $0x20] sm:$0xff]
    %v1012 = vld [vmem:[#allocation2 + $0x28] sm:$0xff]
    %v1013 = vld [vmem:[#allocation2 + $0x30] sm:$0xff]
    %v1014 = vld [vmem:[#allocation2 + $0x38] sm:$0xff]
    %v1015 = vld [vmem:[#allocation2 + $0x40] sm:$0xff]
    %v1016 = vld [vmem:[#allocation2 + $0x48] sm:$0xff]
    %v1017 = vld [vmem:[#allocation2 + $0x50] sm:$0xff]
    %v1018 = vld [vmem:[#allocation2 + $0x58] sm:$0xff]
    %v1019 = vld [vmem:[#allocation2 + $0x60] sm:$0xff]
    %v1020 = vld [vmem:[#allocation2 + $0x68] sm:$0xff]
    %v1021 = vld [vmem:[#allocation2 + $0x70] sm:$0xff]
    %v1022 = vld [vmem:[#allocation2 + $0x78] sm:$0xff]
    %v1023 = vld [vmem:[#allocation2 + $0x80] sm:$0xff]
    %v1024 = vld [vmem:[#allocation2 + $0x88] sm:$0xff]
    %v1025 = vld [vmem:[#allocation2 + $0x90] sm:$0xff]
    %v1026 = vld [vmem:[#allocation2 + $0x98] sm:$0xff]
    %v1027 = vld [vmem:[#allocation2 + $0xa0] sm:$0xff]
    %v1028 = vld [vmem:[#allocation2 + $0xa8] sm:$0xff]
    %v1029 = vld [vmem:[#allocation2 + $0xb0] sm:$0xff]
    %v1030 = vld [vmem:[#allocation2 + $0xb8] sm:$0xff]
    %v1031 = vld [vmem:[#allocation2 + $0xc0] sm:$0xff]
    %v1032 = vld [vmem:[#allocation2 + $0xc8] sm:$0xff]
    %v1033 = vld [vmem:[#allocation2 + $0xd0] sm:$0xff]
    %v1034 = vld [vmem:[#allocation2 + $0xd8] sm:$0xff]
    %v1035 = vld [vmem:[#allocation2 + $0xe0] sm:$0xff]
    %v1036 = vld [vmem:[#allocation2 + $0xe8] sm:$0xff]
    %v1037 = vld [vmem:[#allocation2 + $0xf0] sm:$0xff]
    %v1038 = vld [vmem:[#allocation2 + $0xf8] sm:$0xff]
    %v1039 = vld [vmem:[#allocation2 + $0x100] sm:$0xff]
    %v1040 = vld [vmem:[#allocation2 + $0x108] sm:$0xff]
    %v1041 = vld [vmem:[#allocation2 + $0x110] sm:$0xff]
    %v1042 = vld [vmem:[#allocation2 + $0x118] sm:$0xff]
    %v1043 = vld [vmem:[#allocation2 + $0x120] sm:$0xff]
    %v1044 = vld [vmem:[#allocation2 + $0x128] sm:$0xff]
    %v1045 = vld [vmem:[#allocation2 + $0x130] sm:$0xff]
    %v1046 = vld [vmem:[#allocation2 + $0x138] sm:$0xff]
    %v1047 = vld [vmem:[#allocation2 + $0x140] sm:$0xff]
    %v1048 = vld [vmem:[#allocation2 + $0x148] sm:$0xff]
    %v1049 = vld [vmem:[#allocation2 + $0x150] sm:$0xff]
    %v1050 = vld [vmem:[#allocation2 + $0x158] sm:$0xff]
    %v1051 = vld [vmem:[#allocation2 + $0x160] sm:$0xff]
    %v1052 = vld [vmem:[#allocation2 + $0x168] sm:$0xff]
    %v1053 = vld [vmem:[#allocation2 + $0x170] sm:$0xff]
    %v1054 = vld [vmem:[#allocation2 + $0x178] sm:$0xff]
    %v1055 = vld [vmem:[#allocation2 + $0x180] sm:$0xff]
    %v1056 = vld [vmem:[#allocation2 + $0x188] sm:$0xff]
    %v1057 = vld [vmem:[#allocation2 + $0x190] sm:$0xff]
    %v1058 = vld [vmem:[#allocation2 + $0x198] sm:$0xff]
    %v1059 = vld [vmem:[#allocation2 + $0x1a0] sm:$0xff]
    %v1060 = vld [vmem:[#allocation2 + $0x1a8] sm:$0xff]
    %v1061 = vld [vmem:[#allocation2 + $0x1b0] sm:$0xff]
    %v1062 = vld [vmem:[#allocation2 + $0x1b8] sm:$0xff]
    %v1063 = vld [vmem:[#allocation2 + $0x1c0] sm:$0xff]
    %v1064 = vld [vmem:[#allocation2 + $0x1c8] sm:$0xff]
    %v1065 = vld [vmem:[#allocation2 + $0x1d0] sm:$0xff]
    %v1066 = vld [vmem:[#allocation2 + $0x1d8] sm:$0xff]
    %v1067 = vld [vmem:[#allocation2 + $0x1e0] sm:$0xff]
    %v1068 = vld [vmem:[#allocation2 + $0x1e8] sm:$0xff]
    %v1069 = vld [vmem:[#allocation2 + $0x1f0] sm:$0xff]
    %v1070 = vld [vmem:[#allocation2 + $0x1f8] sm:$0xff]
    %v1071 = vld [vmem:[#allocation2 + $0x200] sm:$0xff]
    %v1072 = vld [vmem:[#allocation2 + $0x208] sm:$0xff]
    %v1073 = vld [vmem:[#allocation2 + $0x210] sm:$0xff]
    %v1074 = vld [vmem:[#allocation2 + $0x218] sm:$0xff]
    %v1075 = vld [vmem:[#allocation2 + $0x220] sm:$0xff]
    %v1076 = vld [vmem:[#allocation2 + $0x228] sm:$0xff]
    %v1077 = vld [vmem:[#allocation2 + $0x230] sm:$0xff]
    %v1078 = vld [vmem:[#allocation2 + $0x238] sm:$0xff]
    %v1079 = vld [vmem:[#allocation2 + $0x240] sm:$0xff]
    %v1080 = vld [vmem:[#allocation2 + $0x248] sm:$0xff]
    %v1081 = vld [vmem:[#allocation2 + $0x250] sm:$0xff]
    %v1082 = vld [vmem:[#allocation2 + $0x258] sm:$0xff]
    %v1083 = vld [vmem:[#allocation2 + $0x260] sm:$0xff]
    %v1084 = vld [vmem:[#allocation2 + $0x268] sm:$0xff]
    %v1085 = vld [vmem:[#allocation2 + $0x270] sm:$0xff]
    %v1086 = vld [vmem:[#allocation2 + $0x278] sm:$0xff]
    %v1087 = vld [vmem:[#allocation2 + $0x280] sm:$0xff]
    %v1088 = vld [vmem:[#allocation2 + $0x288] sm:$0xff]
    %v1089 = vld [vmem:[#allocation2 + $0x290] sm:$0xff]
    %v1090 = vld [vmem:[#allocation2 + $0x298] sm:$0xff]
    %v1091 = vld [vmem:[#allocation2 + $0x2a0] sm:$0xff]
    %v1092 = vld [vmem:[#allocation2 + $0x2a8] sm:$0xff]
    %v1093 = vld [vmem:[#allocation2 + $0x2b0] sm:$0xff]
    %v1094 = vld [vmem:[#allocation2 + $0x2b8] sm:$0xff]
    %v1095 = vld [vmem:[#allocation2 + $0x2c0] sm:$0xff]
    %v1096 = vld [vmem:[#allocation2 + $0x2c8] sm:$0xff]
    %v1097 = vld [vmem:[#allocation2 + $0x2d0] sm:$0xff]
    %v1098 = vld [vmem:[#allocation2 + $0x2d8] sm:$0xff]
    %v1099 = vld [vmem:[#allocation2 + $0x2e0] sm:$0xff]
    %v1100 = vld [vmem:[#allocation2 + $0x2e8] sm:$0xff]
    %v1101 = vld [vmem:[#allocation2 + $0x2f0] sm:$0xff]
    %v1102 = vld [vmem:[#allocation2 + $0x2f8] sm:$0xff]
    %v1103 = vld [vmem:[#allocation2 + $0x300] sm:$0xff]
    %v1104 = vld [vmem:[#allocation2 + $0x308] sm:$0xff]
    %v1105 = vld [vmem:[#allocation2 + $0x310] sm:$0xff]
    %v1106 = vld [vmem:[#allocation2 + $0x318] sm:$0xff]
    %v1107 = vld [vmem:[#allocation2 + $0x320] sm:$0xff]
    %v1108 = vld [vmem:[#allocation2 + $0x328] sm:$0xff]
    %v1109 = vld [vmem:[#allocation2 + $0x330] sm:$0xff]
    %v1110 = vld [vmem:[#allocation2 + $0x338] sm:$0xff]
    %v1111 = vld [vmem:[#allocation2 + $0x340] sm:$0xff]
    %v1112 = vld [vmem:[#allocation2 + $0x348] sm:$0xff]
    %v1113 = vld [vmem:[#allocation2 + $0x350] sm:$0xff]
    %v1114 = vld [vmem:[#allocation2 + $0x358] sm:$0xff]
    %v1115 = vld [vmem:[#allocation2 + $0x360] sm:$0xff]
    %v1116 = vld [vmem:[#allocation2 + $0x368] sm:$0xff]
    %v1117 = vld [vmem:[#allocation2 + $0x370] sm:$0xff]
    %v1118 = vld [vmem:[#allocation2 + $0x378] sm:$0xff]
    %v1119 = vld [vmem:[#allocation2 + $0x380] sm:$0xff]
    %v1120 = vld [vmem:[#allocation2 + $0x388] sm:$0xff]
    %v1121 = vld [vmem:[#allocation2 + $0x390] sm:$0xff]
    %v1122 = vld [vmem:[#allocation2 + $0x398] sm:$0xff]
    %v1123 = vld [vmem:[#allocation2 + $0x3a0] sm:$0xff]
    %v1124 = vld [vmem:[#allocation2 + $0x3a8] sm:$0xff]
    %v1125 = vld [vmem:[#allocation2 + $0x3b0] sm:$0xff]
    %v1126 = vld [vmem:[#allocation2 + $0x3b8] sm:$0xff]
    %v1127 = vld [vmem:[#allocation2 + $0x3c0] sm:$0xff]
    %v1128 = vld [vmem:[#allocation2 + $0x3c8] sm:$0xff]
    %v1129 = vld [vmem:[#allocation2 + $0x3d0] sm:$0xff]
    %v1130 = vld [vmem:[#allocation2 + $0x3d8] sm:$0xff]
    %v1131 = vld [vmem:[#allocation2 + $0x3e0] sm:$0xff]
    %v1132 = vld [vmem:[#allocation2 + $0x3e8] sm:$0xff]
    %v1133 = vld [vmem:[#allocation2 + $0x3f0] sm:$0xff]
    %v1134 = vld [vmem:[#allocation2 + $0x3f8] sm:$0xff]
    %v1135 = vld [vmem:[#allocation2 + $0x400] sm:$0xff]
    %v1136 = vld [vmem:[#allocation2 + $0x408] sm:$0xff]
    %v1137 = vld [vmem:[#allocation2 + $0x410] sm:$0xff]
    %v1138 = vld [vmem:[#allocation2 + $0x418] sm:$0xff]
    %v1139 = vld [vmem:[#allocation2 + $0x420] sm:$0xff]
    %v1140 = vld [vmem:[#allocation2 + $0x428] sm:$0xff]
    %v1141 = vld [vmem:[#allocation2 + $0x430] sm:$0xff]
    %v1142 = vld [vmem:[#allocation2 + $0x438] sm:$0xff]
    %v1143 = vld [vmem:[#allocation2 + $0x440] sm:$0xff]
    %v1144 = vld [vmem:[#allocation2 + $0x448] sm:$0xff]
    %v1145 = vld [vmem:[#allocation2 + $0x450] sm:$0xff]
    %v1146 = vld [vmem:[#allocation2 + $0x458] sm:$0xff]
    %v1147 = vld [vmem:[#allocation2 + $0x460] sm:$0xff]
    %v1148 = vld [vmem:[#allocation2 + $0x468] sm:$0xff]
    %v1149 = vld [vmem:[#allocation2 + $0x470] sm:$0xff]
    %v1150 = vld [vmem:[#allocation2 + $0x478] sm:$0xff]
    %v1151 = vld [vmem:[#allocation2 + $0x480] sm:$0xff]
    %v1152 = vld [vmem:[#allocation2 + $0x488] sm:$0xff]
    %v1153 = vld [vmem:[#allocation2 + $0x490] sm:$0xff]
    %v1154 = vld [vmem:[#allocation2 + $0x498] sm:$0xff]
    %v1155 = vld [vmem:[#allocation2 + $0x4a0] sm:$0xff]
    %v1156 = vld [vmem:[#allocation2 + $0x4a8] sm:$0xff]
    %v1157 = vld [vmem:[#allocation2 + $0x4b0] sm:$0xff]
    %v1158 = vld [vmem:[#allocation2 + $0x4b8] sm:$0xff]
    %v1159 = vld [vmem:[#allocation2 + $0x4c0] sm:$0xff]
    %v1160 = vld [vmem:[#allocation2 + $0x4c8] sm:$0xff]
    %v1161 = vld [vmem:[#allocation2 + $0x4d0] sm:$0xff]
    %v1162 = vld [vmem:[#allocation2 + $0x4d8] sm:$0xff]
    %v1163 = vld [vmem:[#allocation2 + $0x4e0] sm:$0xff]
    %v1164 = vld [vmem:[#allocation2 + $0x4e8] sm:$0xff]
    %v1165 = vld [vmem:[#allocation2 + $0x4f0] sm:$0xff]
    %v1166 = vld [vmem:[#allocation2 + $0x4f8] sm:$0xff]
    %v1167 = vld [vmem:[#allocation2 + $0x500] sm:$0xff]
    %v1168 = vld [vmem:[#allocation2 + $0x508] sm:$0xff]
    %v1169 = vld [vmem:[#allocation2 + $0x510] sm:$0xff]
    %v1170 = vld [vmem:[#allocation2 + $0x518] sm:$0xff]
    %v1171 = vld [vmem:[#allocation2 + $0x520] sm:$0xff]
    %v1172 = vld [vmem:[#allocation2 + $0x528] sm:$0xff]
    %v1173 = vld [vmem:[#allocation2 + $0x530] sm:$0xff]
    %v1174 = vld [vmem:[#allocation2 + $0x538] sm:$0xff]
    %v1175 = vld [vmem:[#allocation2 + $0x540] sm:$0xff]
    %v1176 = vld [vmem:[#allocation2 + $0x548] sm:$0xff]
    %v1177 = vld [vmem:[#allocation2 + $0x550] sm:$0xff]
    %v1178 = vld [vmem:[#allocation2 + $0x558] sm:$0xff]
    %v1179 = vld [vmem:[#allocation2 + $0x560] sm:$0xff]
    %v1180 = vld [vmem:[#allocation2 + $0x568] sm:$0xff]
    %v1181 = vld [vmem:[#allocation2 + $0x570] sm:$0xff]
    %v1182 = vld [vmem:[#allocation2 + $0x578] sm:$0xff]
    %v1183 = vld [vmem:[#allocation2 + $0x580] sm:$0xff]
    %v1184 = vld [vmem:[#allocation2 + $0x588] sm:$0xff]
    %v1185 = vld [vmem:[#allocation2 + $0x590] sm:$0xff]
    %v1186 = vld [vmem:[#allocation2 + $0x598] sm:$0xff]
    %v1187 = vld [vmem:[#allocation2 + $0x5a0] sm:$0xff]
    %v1188 = vld [vmem:[#allocation2 + $0x5a8] sm:$0xff]
    %v1189 = vld [vmem:[#allocation2 + $0x5b0] sm:$0xff]
    %v1190 = vld [vmem:[#allocation2 + $0x5b8] sm:$0xff]
    %v1191 = vld [vmem:[#allocation2 + $0x5c0] sm:$0xff]
    %v1192 = vld [vmem:[#allocation2 + $0x5c8] sm:$0xff]
    %v1193 = vld [vmem:[#allocation2 + $0x5d0] sm:$0xff]
    %v1194 = vld [vmem:[#allocation2 + $0x5d8] sm:$0xff]
    %v1195 = vld [vmem:[#allocation2 + $0x5e0] sm:$0xff]
    %v1196 = vld [vmem:[#allocation2 + $0x5e8] sm:$0xff]
    %v1197 = vld [vmem:[#allocation2 + $0x5f0] sm:$0xff]
    %v1198 = vld [vmem:[#allocation2 + $0x5f8] sm:$0xff]
    %v1199 = vld [vmem:[#allocation2 + $0x600] sm:$0xff]
    %v1200 = vld [vmem:[#allocation2 + $0x608] sm:$0xff]
    %v1201 = vld [vmem:[#allocation2 + $0x610] sm:$0xff]
    %v1202 = vld [vmem:[#allocation2 + $0x618] sm:$0xff]
    %v1203 = vld [vmem:[#allocation2 + $0x620] sm:$0xff]
    %v1204 = vld [vmem:[#allocation2 + $0x628] sm:$0xff]
    %v1205 = vld [vmem:[#allocation2 + $0x630] sm:$0xff]
    %v1206 = vld [vmem:[#allocation2 + $0x638] sm:$0xff]
    %v1207 = vld [vmem:[#allocation2 + $0x640] sm:$0xff]
    %v1208 = vld [vmem:[#allocation2 + $0x648] sm:$0xff]
    %v1209 = vld [vmem:[#allocation2 + $0x650] sm:$0xff]
    %v1210 = vld [vmem:[#allocation2 + $0x658] sm:$0xff]
    %v1211 = vld [vmem:[#allocation2 + $0x660] sm:$0xff]
    %v1212 = vld [vmem:[#allocation2 + $0x668] sm:$0xff]
    %v1213 = vld [vmem:[#allocation2 + $0x670] sm:$0xff]
    %v1214 = vld [vmem:[#allocation2 + $0x678] sm:$0xff]
    %v1215 = vld [vmem:[#allocation2 + $0x680] sm:$0xff]
    %v1216 = vld [vmem:[#allocation2 + $0x688] sm:$0xff]
    %v1217 = vld [vmem:[#allocation2 + $0x690] sm:$0xff]
    %v1218 = vld [vmem:[#allocation2 + $0x698] sm:$0xff]
    %v1219 = vld [vmem:[#allocation2 + $0x6a0] sm:$0xff]
    %v1220 = vld [vmem:[#allocation2 + $0x6a8] sm:$0xff]
    %v1221 = vld [vmem:[#allocation2 + $0x6b0] sm:$0xff]
    %v1222 = vld [vmem:[#allocation2 + $0x6b8] sm:$0xff]
    %v1223 = vld [vmem:[#allocation2 + $0x6c0] sm:$0xff]
    %v1224 = vld [vmem:[#allocation2 + $0x6c8] sm:$0xff]
    %v1225 = vld [vmem:[#allocation2 + $0x6d0] sm:$0xff]
    %v1226 = vld [vmem:[#allocation2 + $0x6d8] sm:$0xff]
    %v1227 = vld [vmem:[#allocation2 + $0x6e0] sm:$0xff]
    %v1228 = vld [vmem:[#allocation2 + $0x6e8] sm:$0xff]
    %v1229 = vld [vmem:[#allocation2 + $0x6f0] sm:$0xff]
    %v1230 = vld [vmem:[#allocation2 + $0x6f8] sm:$0xff]
    %v1231 = vld [vmem:[#allocation2 + $0x700] sm:$0xff]
    %v1232 = vld [vmem:[#allocation2 + $0x708] sm:$0xff]
    %v1233 = vld [vmem:[#allocation2 + $0x710] sm:$0xff]
    %v1234 = vld [vmem:[#allocation2 + $0x718] sm:$0xff]
    %v1235 = vld [vmem:[#allocation2 + $0x720] sm:$0xff]
    %v1236 = vld [vmem:[#allocation2 + $0x728] sm:$0xff]
    %v1237 = vld [vmem:[#allocation2 + $0x730] sm:$0xff]
    %v1238 = vld [vmem:[#allocation2 + $0x738] sm:$0xff]
    %v1239 = vld [vmem:[#allocation2 + $0x740] sm:$0xff]
    %v1240 = vld [vmem:[#allocation2 + $0x748] sm:$0xff]
    %v1241 = vld [vmem:[#allocation2 + $0x750] sm:$0xff]
    %v1242 = vld [vmem:[#allocation2 + $0x758] sm:$0xff]
    %v1243 = vld [vmem:[#allocation2 + $0x760] sm:$0xff]
    %v1244 = vld [vmem:[#allocation2 + $0x768] sm:$0xff]
    %v1245 = vld [vmem:[#allocation2 + $0x770] sm:$0xff]
    %v1246 = vld [vmem:[#allocation2 + $0x778] sm:$0xff]
    %v1247 = vld [vmem:[#allocation2 + $0x780] sm:$0xff]
    %v1248 = vld [vmem:[#allocation2 + $0x788] sm:$0xff]
    %v1249 = vld [vmem:[#allocation2 + $0x790] sm:$0xff]
    %v1250 = vld [vmem:[#allocation2 + $0x798] sm:$0xff]
    %v1251 = vld [vmem:[#allocation2 + $0x7a0] sm:$0xff]
    %v1252 = vld [vmem:[#allocation2 + $0x7a8] sm:$0xff]
    %v1253 = vld [vmem:[#allocation2 + $0x7b0] sm:$0xff]
    %v1254 = vld [vmem:[#allocation2 + $0x7b8] sm:$0xff]
    %v1255 = vld [vmem:[#allocation2 + $0x7c0] sm:$0xff]
    %v1256 = vld [vmem:[#allocation2 + $0x7c8] sm:$0xff]
    %v1257 = vld [vmem:[#allocation2 + $0x7d0] sm:$0xff]
    %v1258 = vld [vmem:[#allocation2 + $0x7d8] sm:$0xff]
    %v1259 = vld [vmem:[#allocation2 + $0x7e0] sm:$0xff]
    %v1260 = vld [vmem:[#allocation2 + $0x7e8] sm:$0xff]
    %v1261 = vld [vmem:[#allocation2 + $0x7f0] sm:$0xff]
    %v1262 = vld [vmem:[#allocation2 + $0x7f8] sm:$0xff]
    %v1263 = vpack.c.bf16 %v999, %v995
    %v1264 = vpack.c.bf16 %v1000, %v996
    %v1265 = vpack.c.bf16 %v1001, %v997
    %v1266 = vpack.c.bf16 %v1002, %v998
    %v1267 = vld [vmem:[#allocation9 + $0x7] sm:$0xff]
    %v1269 = vlaneseq
    %v1270 = vshrl.u32 %v1269, 7
    %v1271 = vsub.s32 0, %v1270
    %v1272 = vrot.slane %v1267, %v1271
    %v1273 = vlaneseq
    %v1274 = vshrl.u32 %v1273, 7
    %v1275 = vsub.s32 1, %v1274
    %v1276 = vrot.slane %v1267, %v1275
    %v1277 = vlaneseq
    %v1278 = vshrl.u32 %v1277, 7
    %v1279 = vsub.s32 2, %v1278
    %v1280 = vrot.slane %v1267, %v1279
    %v1281 = vlaneseq
    %v1282 = vshrl.u32 %v1281, 7
    %v1283 = vsub.s32 3, %v1282
    %v1284 = vrot.slane %v1267, %v1283
    %v1285 = vlaneseq
    %v1286 = vshrl.u32 %v1285, 7
    %v1287 = vsub.s32 4, %v1286
    %v1288 = vrot.slane %v1267, %v1287
    %v1289 = vlaneseq
    %v1290 = vshrl.u32 %v1289, 7
    %v1291 = vsub.s32 5, %v1290
    %v1292 = vrot.slane %v1267, %v1291
    %v1293 = vlaneseq
    %v1294 = vshrl.u32 %v1293, 7
    %v1295 = vsub.s32 6, %v1294
    %v1296 = vrot.slane %v1267, %v1295
    %v1297 = vlaneseq
    %v1298 = vshrl.u32 %v1297, 7
    %v1299 = vsub.s32 7, %v1298
    %v1300 = vrot.slane %v1267, %v1299
    %1309 = vmatprep.subr.bf16.mxu0 %v1008
    %1310 = vmatpush1.bf16.msra.mxu0 %v1007
    %1311 = vmatprep.subr.bf16.mxu0 %v1016
    %1312 = vmatpush1.bf16.msra.mxu0 %v1015
    %1313 = vmatprep.subr.bf16.mxu0 %v1024
    %1314 = vmatpush1.bf16.msra.mxu0 %v1023
    %1315 = vmatprep.subr.bf16.mxu0 %v1032
    %1316 = vmatpush1.bf16.msra.mxu0 %v1031
    %1317 = vmatprep.subr.bf16.mxu0 %v1040
    %1318 = vmatpush1.bf16.msra.mxu0 %v1039
    %1319 = vmatprep.subr.bf16.mxu0 %v1048
    %1320 = vmatpush1.bf16.msra.mxu0 %v1047
    %1321 = vmatprep.subr.bf16.mxu0 %v1056
    %1322 = vmatpush1.bf16.msra.mxu0 %v1055
    %1323 = vmatprep.subr.bf16.mxu0 %v1064
    %1324 = vmatpush1.bf16.msra.mxu0 %v1063
    %1325 = vmatprep.subr.bf16.mxu0 %v1072
    %1326 = vmatpush1.bf16.msra.mxu0 %v1071
    %1327 = vmatprep.subr.bf16.mxu0 %v1080
    %1328 = vmatpush1.bf16.msra.mxu0 %v1079
    %1329 = vmatprep.subr.bf16.mxu0 %v1088
    %1330 = vmatpush1.bf16.msra.mxu0 %v1087
    %1331 = vmatprep.subr.bf16.mxu0 %v1096
    %1332 = vmatpush1.bf16.msra.mxu0 %v1095
    %1333 = vmatprep.subr.bf16.mxu0 %v1104
    %1334 = vmatpush1.bf16.msra.mxu0 %v1103
    %1335 = vmatprep.subr.bf16.mxu0 %v1112
    %1336 = vmatpush1.bf16.msra.mxu0 %v1111
    %1337 = vmatprep.subr.bf16.mxu0 %v1120
    %1338 = vmatpush1.bf16.msra.mxu0 %v1119
    %1339 = vmatprep.subr.bf16.mxu0 %v1128
    %1340 = vmatpush1.bf16.msra.mxu0 %v1127
    %1341 = vmatprep.mubr.bf16.mxu0 %v1264
    %1342 = vmatmul.mubr.bf16.gmra.mrb[0].mxu0 %v1263
    %v1343 = vpop.f32.mrb[0].mxu0
    %v1344 = vadd.f32 %v1272, %v1343
    %v1345 = vpop.f32.mrb[0].mxu0
    %v1346 = vadd.f32 %v1276, %v1345
    %v1347 = vpop.f32.mrb[0].mxu0
    %v1348 = vadd.f32 %v1272, %v1347
    %v1349 = vpop.f32.mrb[0].mxu0
    %v1350 = vadd.f32 %v1276, %v1349
    %1351 = vdwg.mxu0
    %1352 = vmatprep.subr.bf16.mxu0 %v1136
    %1353 = vmatpush1.bf16.msra.mxu0 %v1135
    %1354 = vmatprep.subr.bf16.mxu0 %v1144
    %1355 = vmatpush1.bf16.msra.mxu0 %v1143
    %1356 = vmatprep.subr.bf16.mxu0 %v1152
    %1357 = vmatpush1.bf16.msra.mxu0 %v1151
    %1358 = vmatprep.subr.bf16.mxu0 %v1160
    %1359 = vmatpush1.bf16.msra.mxu0 %v1159
    %1360 = vmatprep.subr.bf16.mxu0 %v1168
    %1361 = vmatpush1.bf16.msra.mxu0 %v1167
    %1362 = vmatprep.subr.bf16.mxu0 %v1176
    %1363 = vmatpush1.bf16.msra.mxu0 %v1175
    %1364 = vmatprep.subr.bf16.mxu0 %v1184
    %1365 = vmatpush1.bf16.msra.mxu0 %v1183
    %1366 = vmatprep.subr.bf16.mxu0 %v1192
    %1367 = vmatpush1.bf16.msra.mxu0 %v1191
    %1368 = vmatprep.subr.bf16.mxu0 %v1200
    %1369 = vmatpush1.bf16.msra.mxu0 %v1199
    %1370 = vmatprep.subr.bf16.mxu0 %v1208
    %1371 = vmatpush1.bf16.msra.mxu0 %v1207
    %1372 = vmatprep.subr.bf16.mxu0 %v1216
    %1373 = vmatpush1.bf16.msra.mxu0 %v1215
    %1374 = vmatprep.subr.bf16.mxu0 %v1224
    %1375 = vmatpush1.bf16.msra.mxu0 %v1223
    %1376 = vmatprep.subr.bf16.mxu0 %v1232
    %1377 = vmatpush1.bf16.msra.mxu0 %v1231
    %1378 = vmatprep.subr.bf16.mxu0 %v1240
    %1379 = vmatpush1.bf16.msra.mxu0 %v1239
    %1380 = vmatprep.subr.bf16.mxu0 %v1248
    %1381 = vmatpush1.bf16.msra.mxu0 %v1247
    %1382 = vmatprep.subr.bf16.mxu0 %v1256
    %1383 = vmatpush1.bf16.msra.mxu0 %v1255
    %1384 = vmatprep.mubr.bf16.mxu0 %v1266
    %1385 = vmatmul.mubr.bf16.gmra.mrb[0].mxu0 %v1265
    %v1386 = vpop.f32.mrb[0].mxu0
    %v1387 = vadd.f32 %v1344, %v1386
    %v1388 = vpop.f32.mrb[0].mxu0
    %v1389 = vadd.f32 %v1346, %v1388
    %v1390 = vpop.f32.mrb[0].mxu0
    %v1391 = vadd.f32 %v1348, %v1390
    %v1392 = vpop.f32.mrb[0].mxu0
    %v1393 = vadd.f32 %v1350, %v1392
    %1394 = vdwg.mxu0
    %1395 = vmatprep.subr.bf16.mxu0 %v1010
    %1396 = vmatpush1.bf16.msra.mxu0 %v1009
    %1397 = vmatprep.subr.bf16.mxu0 %v1018
    %1398 = vmatpush1.bf16.msra.mxu0 %v1017
    %1399 = vmatprep.subr.bf16.mxu0 %v1026
    %1400 = vmatpush1.bf16.msra.mxu0 %v1025
    %1401 = vmatprep.subr.bf16.mxu0 %v1034
    %1402 = vmatpush1.bf16.msra.mxu0 %v1033
    %1403 = vmatprep.subr.bf16.mxu0 %v1042
    %1404 = vmatpush1.bf16.msra.mxu0 %v1041
    %1405 = vmatprep.subr.bf16.mxu0 %v1050
    %1406 = vmatpush1.bf16.msra.mxu0 %v1049
    %1407 = vmatprep.subr.bf16.mxu0 %v1058
    %1408 = vmatpush1.bf16.msra.mxu0 %v1057
    %1409 = vmatprep.subr.bf16.mxu0 %v1066
    %1410 = vmatpush1.bf16.msra.mxu0 %v1065
    %1411 = vmatprep.subr.bf16.mxu0 %v1074
    %1412 = vmatpush1.bf16.msra.mxu0 %v1073
    %1413 = vmatprep.subr.bf16.mxu0 %v1082
    %1414 = vmatpush1.bf16.msra.mxu0 %v1081
    %1415 = vmatprep.subr.bf16.mxu0 %v1090
    %1416 = vmatpush1.bf16.msra.mxu0 %v1089
    %1417 = vmatprep.subr.bf16.mxu0 %v1098
    %1418 = vmatpush1.bf16.msra.mxu0 %v1097
    %1419 = vmatprep.subr.bf16.mxu0 %v1106
    %1420 = vmatpush1.bf16.msra.mxu0 %v1105
    %1421 = vmatprep.subr.bf16.mxu0 %v1114
    %1422 = vmatpush1.bf16.msra.mxu0 %v1113
    %1423 = vmatprep.subr.bf16.mxu0 %v1122
    %1424 = vmatpush1.bf16.msra.mxu0 %v1121
    %1425 = vmatprep.subr.bf16.mxu0 %v1130
    %1426 = vmatpush1.bf16.msra.mxu0 %v1129
    %1427 = vmatprep.mubr.bf16.mxu0 %v1264
    %1428 = vmatmul.mubr.bf16.gmra.mrb[0].mxu0 %v1263
    %v1429 = vpop.f32.mrb[0].mxu0
    %v1430 = vadd.f32 %v1280, %v1429
    %v1431 = vpop.f32.mrb[0].mxu0
    %v1432 = vadd.f32 %v1284, %v1431
    %v1433 = vpop.f32.mrb[0].mxu0
    %v1434 = vadd.f32 %v1280, %v1433
    %v1435 = vpop.f32.mrb[0].mxu0
    %v1436 = vadd.f32 %v1284, %v1435
    %1437 = vdwg.mxu0
    %1438 = vmatprep.subr.bf16.mxu0 %v1138
    %1439 = vmatpush1.bf16.msra.mxu0 %v1137
    %1440 = vmatprep.subr.bf16.mxu0 %v1146
    %1441 = vmatpush1.bf16.msra.mxu0 %v1145
    %1442 = vmatprep.subr.bf16.mxu0 %v1154
    %1443 = vmatpush1.bf16.msra.mxu0 %v1153
    %1444 = vmatprep.subr.bf16.mxu0 %v1162
    %1445 = vmatpush1.bf16.msra.mxu0 %v1161
    %1446 = vmatprep.subr.bf16.mxu0 %v1170
    %1447 = vmatpush1.bf16.msra.mxu0 %v1169
    %1448 = vmatprep.subr.bf16.mxu0 %v1178
    %1449 = vmatpush1.bf16.msra.mxu0 %v1177
    %1450 = vmatprep.subr.bf16.mxu0 %v1186
    %1451 = vmatpush1.bf16.msra.mxu0 %v1185
    %1452 = vmatprep.subr.bf16.mxu0 %v1194
    %1453 = vmatpush1.bf16.msra.mxu0 %v1193
    %1454 = vmatprep.subr.bf16.mxu0 %v1202
    %1455 = vmatpush1.bf16.msra.mxu0 %v1201
    %1456 = vmatprep.subr.bf16.mxu0 %v1210
    %1457 = vmatpush1.bf16.msra.mxu0 %v1209
    %1458 = vmatprep.subr.bf16.mxu0 %v1218
    %1459 = vmatpush1.bf16.msra.mxu0 %v1217
    %1460 = vmatprep.subr.bf16.mxu0 %v1226
    %1461 = vmatpush1.bf16.msra.mxu0 %v1225
    %1462 = vmatprep.subr.bf16.mxu0 %v1234
    %1463 = vmatpush1.bf16.msra.mxu0 %v1233
    %1464 = vmatprep.subr.bf16.mxu0 %v1242
    %1465 = vmatpush1.bf16.msra.mxu0 %v1241
    %1466 = vmatprep.subr.bf16.mxu0 %v1250
    %1467 = vmatpush1.bf16.msra.mxu0 %v1249
    %1468 = vmatprep.subr.bf16.mxu0 %v1258
    %1469 = vmatpush1.bf16.msra.mxu0 %v1257
    %1470 = vmatprep.mubr.bf16.mxu0 %v1266
    %1471 = vmatmul.mubr.bf16.gmra.mrb[0].mxu0 %v1265
    %v1472 = vpop.f32.mrb[0].mxu0
    %v1473 = vadd.f32 %v1430, %v1472
    %v1474 = vpop.f32.mrb[0].mxu0
    %v1475 = vadd.f32 %v1432, %v1474
    %v1476 = vpop.f32.mrb[0].mxu0
    %v1477 = vadd.f32 %v1434, %v1476
    %v1478 = vpop.f32.mrb[0].mxu0
    %v1479 = vadd.f32 %v1436, %v1478
    %1480 = vdwg.mxu0
    %1481 = vmatprep.subr.bf16.mxu0 %v1012
    %1482 = vmatpush1.bf16.msra.mxu0 %v1011
    %1483 = vmatprep.subr.bf16.mxu0 %v1020
    %1484 = vmatpush1.bf16.msra.mxu0 %v1019
    %1485 = vmatprep.subr.bf16.mxu0 %v1028
    %1486 = vmatpush1.bf16.msra.mxu0 %v1027
    %1487 = vmatprep.subr.bf16.mxu0 %v1036
    %1488 = vmatpush1.bf16.msra.mxu0 %v1035
    %1489 = vmatprep.subr.bf16.mxu0 %v1044
    %1490 = vmatpush1.bf16.msra.mxu0 %v1043
    %1491 = vmatprep.subr.bf16.mxu0 %v1052
    %1492 = vmatpush1.bf16.msra.mxu0 %v1051
    %1493 = vmatprep.subr.bf16.mxu0 %v1060
    %1494 = vmatpush1.bf16.msra.mxu0 %v1059
    %1495 = vmatprep.subr.bf16.mxu0 %v1068
    %1496 = vmatpush1.bf16.msra.mxu0 %v1067
    %1497 = vmatprep.subr.bf16.mxu0 %v1076
    %1498 = vmatpush1.bf16.msra.mxu0 %v1075
    %1499 = vmatprep.subr.bf16.mxu0 %v1084
    %1500 = vmatpush1.bf16.msra.mxu0 %v1083
    %1501 = vmatprep.subr.bf16.mxu0 %v1092
    %1502 = vmatpush1.bf16.msra.mxu0 %v1091
    %1503 = vmatprep.subr.bf16.mxu0 %v1100
    %1504 = vmatpush1.bf16.msra.mxu0 %v1099
    %1505 = vmatprep.subr.bf16.mxu0 %v1108
    %1506 = vmatpush1.bf16.msra.mxu0 %v1107
    %1507 = vmatprep.subr.bf16.mxu0 %v1116
    %1508 = vmatpush1.bf16.msra.mxu0 %v1115
    %1509 = vmatprep.subr.bf16.mxu0 %v1124
    %1510 = vmatpush1.bf16.msra.mxu0 %v1123
    %1511 = vmatprep.subr.bf16.mxu0 %v1132
    %1512 = vmatpush1.bf16.msra.mxu0 %v1131
    %1513 = vmatprep.mubr.bf16.mxu0 %v1264
    %1514 = vmatmul.mubr.bf16.gmra.mrb[0].mxu0 %v1263
    %v1515 = vpop.f32.mrb[0].mxu0
    %v1516 = vadd.f32 %v1288, %v1515
    %v1517 = vpop.f32.mrb[0].mxu0
    %v1518 = vadd.f32 %v1292, %v1517
    %v1519 = vpop.f32.mrb[0].mxu0
    %v1520 = vadd.f32 %v1288, %v1519
    %v1521 = vpop.f32.mrb[0].mxu0
    %v1522 = vadd.f32 %v1292, %v1521
    %1523 = vdwg.mxu0
    %1524 = vmatprep.subr.bf16.mxu0 %v1140
    %1525 = vmatpush1.bf16.msra.mxu0 %v1139
    %1526 = vmatprep.subr.bf16.mxu0 %v1148
    %1527 = vmatpush1.bf16.msra.mxu0 %v1147
    %1528 = vmatprep.subr.bf16.mxu0 %v1156
    %1529 = vmatpush1.bf16.msra.mxu0 %v1155
    %1530 = vmatprep.subr.bf16.mxu0 %v1164
    %1531 = vmatpush1.bf16.msra.mxu0 %v1163
    %1532 = vmatprep.subr.bf16.mxu0 %v1172
    %1533 = vmatpush1.bf16.msra.mxu0 %v1171
    %1534 = vmatprep.subr.bf16.mxu0 %v1180
    %1535 = vmatpush1.bf16.msra.mxu0 %v1179
    %1536 = vmatprep.subr.bf16.mxu0 %v1188
    %1537 = vmatpush1.bf16.msra.mxu0 %v1187
    %1538 = vmatprep.subr.bf16.mxu0 %v1196
    %1539 = vmatpush1.bf16.msra.mxu0 %v1195
    %1540 = vmatprep.subr.bf16.mxu0 %v1204
    %1541 = vmatpush1.bf16.msra.mxu0 %v1203
    %1542 = vmatprep.subr.bf16.mxu0 %v1212
    %1543 = vmatpush1.bf16.msra.mxu0 %v1211
    %1544 = vmatprep.subr.bf16.mxu0 %v1220
    %1545 = vmatpush1.bf16.msra.mxu0 %v1219
    %1546 = vmatprep.subr.bf16.mxu0 %v1228
    %1547 = vmatpush1.bf16.msra.mxu0 %v1227
    %1548 = vmatprep.subr.bf16.mxu0 %v1236
    %1549 = vmatpush1.bf16.msra.mxu0 %v1235
    %1550 = vmatprep.subr.bf16.mxu0 %v1244
    %1551 = vmatpush1.bf16.msra.mxu0 %v1243
    %1552 = vmatprep.subr.bf16.mxu0 %v1252
    %1553 = vmatpush1.bf16.msra.mxu0 %v1251
    %1554 = vmatprep.subr.bf16.mxu0 %v1260
    %1555 = vmatpush1.bf16.msra.mxu0 %v1259
    %1556 = vmatprep.mubr.bf16.mxu0 %v1266
    %1557 = vmatmul.mubr.bf16.gmra.mrb[0].mxu0 %v1265
    %v1558 = vpop.f32.mrb[0].mxu0
    %v1559 = vadd.f32 %v1516, %v1558
    %v1560 = vpop.f32.mrb[0].mxu0
    %v1561 = vadd.f32 %v1518, %v1560
    %v1562 = vpop.f32.mrb[0].mxu0
    %v1563 = vadd.f32 %v1520, %v1562
    %v1564 = vpop.f32.mrb[0].mxu0
    %v1565 = vadd.f32 %v1522, %v1564
    %1566 = vdwg.mxu0
    %1567 = vmatprep.subr.bf16.mxu0 %v1014
    %1568 = vmatpush1.bf16.msra.mxu0 %v1013
    %1569 = vmatprep.subr.bf16.mxu0 %v1022
    %1570 = vmatpush1.bf16.msra.mxu0 %v1021
    %1571 = vmatprep.subr.bf16.mxu0 %v1030
    %1572 = vmatpush1.bf16.msra.mxu0 %v1029
    %1573 = vmatprep.subr.bf16.mxu0 %v1038
    %1574 = vmatpush1.bf16.msra.mxu0 %v1037
    %1575 = vmatprep.subr.bf16.mxu0 %v1046
    %1576 = vmatpush1.bf16.msra.mxu0 %v1045
    %1577 = vmatprep.subr.bf16.mxu0 %v1054
    %1578 = vmatpush1.bf16.msra.mxu0 %v1053
    %1579 = vmatprep.subr.bf16.mxu0 %v1062
    %1580 = vmatpush1.bf16.msra.mxu0 %v1061
    %1581 = vmatprep.subr.bf16.mxu0 %v1070
    %1582 = vmatpush1.bf16.msra.mxu0 %v1069
    %1583 = vmatprep.subr.bf16.mxu0 %v1078
    %1584 = vmatpush1.bf16.msra.mxu0 %v1077
    %1585 = vmatprep.subr.bf16.mxu0 %v1086
    %1586 = vmatpush1.bf16.msra.mxu0 %v1085
    %1587 = vmatprep.subr.bf16.mxu0 %v1094
    %1588 = vmatpush1.bf16.msra.mxu0 %v1093
    %1589 = vmatprep.subr.bf16.mxu0 %v1102
    %1590 = vmatpush1.bf16.msra.mxu0 %v1101
    %1591 = vmatprep.subr.bf16.mxu0 %v1110
    %1592 = vmatpush1.bf16.msra.mxu0 %v1109
    %1593 = vmatprep.subr.bf16.mxu0 %v1118
    %1594 = vmatpush1.bf16.msra.mxu0 %v1117
    %1595 = vmatprep.subr.bf16.mxu0 %v1126
    %1596 = vmatpush1.bf16.msra.mxu0 %v1125
    %1597 = vmatprep.subr.bf16.mxu0 %v1134
    %1598 = vmatpush1.bf16.msra.mxu0 %v1133
    %1599 = vmatprep.mubr.bf16.mxu0 %v1264
    %1600 = vmatmul.mubr.bf16.gmra.mrb[0].mxu0 %v1263
    %v1601 = vpop.f32.mrb[0].mxu0
    %v1602 = vadd.f32 %v1296, %v1601
    %v1603 = vpop.f32.mrb[0].mxu0
    %v1604 = vadd.f32 %v1300, %v1603
    %v1605 = vpop.f32.mrb[0].mxu0
    %v1606 = vadd.f32 %v1296, %v1605
    %v1607 = vpop.f32.mrb[0].mxu0
    %v1608 = vadd.f32 %v1300, %v1607
    %1609 = vdwg.mxu0
    %1610 = vmatprep.subr.bf16.mxu0 %v1142
    %1611 = vmatpush1.bf16.msra.mxu0 %v1141
    %1612 = vmatprep.subr.bf16.mxu0 %v1150
    %1613 = vmatpush1.bf16.msra.mxu0 %v1149
    %1614 = vmatprep.subr.bf16.mxu0 %v1158
    %1615 = vmatpush1.bf16.msra.mxu0 %v1157
    %1616 = vmatprep.subr.bf16.mxu0 %v1166
    %1617 = vmatpush1.bf16.msra.mxu0 %v1165
    %1618 = vmatprep.subr.bf16.mxu0 %v1174
    %1619 = vmatpush1.bf16.msra.mxu0 %v1173
    %1620 = vmatprep.subr.bf16.mxu0 %v1182
    %1621 = vmatpush1.bf16.msra.mxu0 %v1181
    %1622 = vmatprep.subr.bf16.mxu0 %v1190
    %1623 = vmatpush1.bf16.msra.mxu0 %v1189
    %1624 = vmatprep.subr.bf16.mxu0 %v1198
    %1625 = vmatpush1.bf16.msra.mxu0 %v1197
    %1626 = vmatprep.subr.bf16.mxu0 %v1206
    %1627 = vmatpush1.bf16.msra.mxu0 %v1205
    %1628 = vmatprep.subr.bf16.mxu0 %v1214
    %1629 = vmatpush1.bf16.msra.mxu0 %v1213
    %1630 = vmatprep.subr.bf16.mxu0 %v1222
    %1631 = vmatpush1.bf16.msra.mxu0 %v1221
    %1632 = vmatprep.subr.bf16.mxu0 %v1230
    %1633 = vmatpush1.bf16.msra.mxu0 %v1229
    %1634 = vmatprep.subr.bf16.mxu0 %v1238
    %1635 = vmatpush1.bf16.msra.mxu0 %v1237
    %1636 = vmatprep.subr.bf16.mxu0 %v1246
    %1637 = vmatpush1.bf16.msra.mxu0 %v1245
    %1638 = vmatprep.subr.bf16.mxu0 %v1254
    %1639 = vmatpush1.bf16.msra.mxu0 %v1253
    %1640 = vmatprep.subr.bf16.mxu0 %v1262
    %1641 = vmatpush1.bf16.msra.mxu0 %v1261
    %1642 = vmatprep.mubr.bf16.mxu0 %v1266
    %1643 = vmatmul.mubr.bf16.gmra.mrb[0].mxu0 %v1265
    %v1644 = vpop.f32.mrb[0].mxu0
    %v1645 = vadd.f32 %v1602, %v1644
    %v1646 = vpop.f32.mrb[0].mxu0
    %v1647 = vadd.f32 %v1604, %v1646
    %v1648 = vpop.f32.mrb[0].mxu0
    %v1649 = vadd.f32 %v1606, %v1648
    %v1650 = vpop.f32.mrb[0].mxu0
    %v1651 = vadd.f32 %v1608, %v1650
    %1652 = vdwg.mxu0
    %v1653 = vadd.f32 %v1387, %v1391
    %v1654 = vrot.slane %v1653, 4
    %v1655 = vadd.f32 %v1653, %v1654
    %v1656 = vrot.slane %v1655, 2
    %v1657 = vadd.f32 %v1655, %v1656
    %v1658 = vrot.slane %v1657, 1
    %v1659 = vadd.f32 %v1657, %v1658
    %v1660 = vadd.f32 %v1389, %v1393
    %v1661 = vrot.slane %v1660, 4
    %v1662 = vadd.f32 %v1660, %v1661
    %v1663 = vrot.slane %v1662, 2
    %v1664 = vadd.f32 %v1662, %v1663
    %v1665 = vrot.slane %v1664, 1
    %v1666 = vadd.f32 %v1664, %v1665
    %v1667 = vadd.f32 %v1473, %v1477
    %v1668 = vrot.slane %v1667, 4
    %v1669 = vadd.f32 %v1667, %v1668
    %v1670 = vrot.slane %v1669, 2
    %v1671 = vadd.f32 %v1669, %v1670
    %v1672 = vrot.slane %v1671, 1
    %v1673 = vadd.f32 %v1671, %v1672
    %v1674 = vadd.f32 %v1475, %v1479
    %v1675 = vrot.slane %v1674, 4
    %v1676 = vadd.f32 %v1674, %v1675
    %v1677 = vrot.slane %v1676, 2
    %v1678 = vadd.f32 %v1676, %v1677
    %v1679 = vrot.slane %v1678, 1
    %v1680 = vadd.f32 %v1678, %v1679
    %v1681 = vadd.f32 %v1559, %v1563
    %v1682 = vrot.slane %v1681, 4
    %v1683 = vadd.f32 %v1681, %v1682
    %v1684 = vrot.slane %v1683, 2
    %v1685 = vadd.f32 %v1683, %v1684
    %v1686 = vrot.slane %v1685, 1
    %v1687 = vadd.f32 %v1685, %v1686
    %v1688 = vadd.f32 %v1561, %v1565
    %v1689 = vrot.slane %v1688, 4
    %v1690 = vadd.f32 %v1688, %v1689
    %v1691 = vrot.slane %v1690, 2
    %v1692 = vadd.f32 %v1690, %v1691
    %v1693 = vrot.slane %v1692, 1
    %v1694 = vadd.f32 %v1692, %v1693
    %v1695 = vadd.f32 %v1645, %v1649
    %v1696 = vrot.slane %v1695, 4
    %v1697 = vadd.f32 %v1695, %v1696
    %v1698 = vrot.slane %v1697, 2
    %v1699 = vadd.f32 %v1697, %v1698
    %v1700 = vrot.slane %v1699, 1
    %v1701 = vadd.f32 %v1699, %v1700
    %v1702 = vadd.f32 %v1647, %v1651
    %v1703 = vrot.slane %v1702, 4
    %v1704 = vadd.f32 %v1702, %v1703
    %v1705 = vrot.slane %v1704, 2
    %v1706 = vadd.f32 %v1704, %v1705
    %v1707 = vrot.slane %v1706, 1
    %v1708 = vadd.f32 %v1706, %v1707
    %v1709 = vmul.f32 %v1659, %v354
    %v1710 = vmul.f32 %v1666, %v354
    %v1711 = vmul.f32 %v1673, %v354
    %v1712 = vmul.f32 %v1680, %v354
    %v1713 = vmul.f32 %v1687, %v354
    %v1714 = vmul.f32 %v1694, %v354
    %v1715 = vmul.f32 %v1701, %v354
    %v1716 = vmul.f32 %v1708, %v354
    %v1717 = vsub.f32 %v1387, %v1709
    %v1718 = vsub.f32 %v1389, %v1710
    %v1719 = vsub.f32 %v1473, %v1711
    %v1720 = vsub.f32 %v1475, %v1712
    %v1721 = vsub.f32 %v1559, %v1713
    %v1722 = vsub.f32 %v1561, %v1714
    %v1723 = vsub.f32 %v1645, %v1715
    %v1724 = vsub.f32 %v1647, %v1716
    %v1725 = vsub.f32 %v1391, %v1709
    %v1726 = vsub.f32 %v1393, %v1710
    %v1727 = vsub.f32 %v1477, %v1711
    %v1728 = vsub.f32 %v1479, %v1712
    %v1729 = vsub.f32 %v1563, %v1713
    %v1730 = vsub.f32 %v1565, %v1714
    %v1731 = vsub.f32 %v1649, %v1715
    %v1732 = vsub.f32 %v1651, %v1716
    %v1733 = vmul.f32 %v1717, %v1717
    %v1734 = vmul.f32 %v1718, %v1718
    %v1735 = vmul.f32 %v1719, %v1719
    %v1736 = vmul.f32 %v1720, %v1720
    %v1737 = vmul.f32 %v1721, %v1721
    %v1738 = vmul.f32 %v1722, %v1722
    %v1739 = vmul.f32 %v1723, %v1723
    %v1740 = vmul.f32 %v1724, %v1724
    %v1741 = vmul.f32 %v1725, %v1725
    %v1742 = vmul.f32 %v1726, %v1726
    %v1743 = vmul.f32 %v1727, %v1727
    %v1744 = vmul.f32 %v1728, %v1728
    %v1745 = vmul.f32 %v1729, %v1729
    %v1746 = vmul.f32 %v1730, %v1730
    %v1747 = vmul.f32 %v1731, %v1731
    %v1748 = vmul.f32 %v1732, %v1732
    %v1749 = vadd.f32 %v1733, %v1741
    %v1750 = vrot.slane %v1749, 4
    %v1751 = vadd.f32 %v1749, %v1750
    %v1752 = vrot.slane %v1751, 2
    %v1753 = vadd.f32 %v1751, %v1752
    %v1754 = vrot.slane %v1753, 1
    %v1755 = vadd.f32 %v1753, %v1754
    %v1756 = vadd.f32 %v1734, %v1742
    %v1757 = vrot.slane %v1756, 4
    %v1758 = vadd.f32 %v1756, %v1757
    %v1759 = vrot.slane %v1758, 2
    %v1760 = vadd.f32 %v1758, %v1759
    %v1761 = vrot.slane %v1760, 1
    %v1762 = vadd.f32 %v1760, %v1761
    %v1763 = vadd.f32 %v1735, %v1743
    %v1764 = vrot.slane %v1763, 4
    %v1765 = vadd.f32 %v1763, %v1764
    %v1766 = vrot.slane %v1765, 2
    %v1767 = vadd.f32 %v1765, %v1766
    %v1768 = vrot.slane %v1767, 1
    %v1769 = vadd.f32 %v1767, %v1768
    %v1770 = vadd.f32 %v1736, %v1744
    %v1771 = vrot.slane %v1770, 4
    %v1772 = vadd.f32 %v1770, %v1771
    %v1773 = vrot.slane %v1772, 2
    %v1774 = vadd.f32 %v1772, %v1773
    %v1775 = vrot.slane %v1774, 1
    %v1776 = vadd.f32 %v1774, %v1775
    %v1777 = vadd.f32 %v1737, %v1745
    %v1778 = vrot.slane %v1777, 4
    %v1779 = vadd.f32 %v1777, %v1778
    %v1780 = vrot.slane %v1779, 2
    %v1781 = vadd.f32 %v1779, %v1780
    %v1782 = vrot.slane %v1781, 1
    %v1783 = vadd.f32 %v1781, %v1782
    %v1784 = vadd.f32 %v1738, %v1746
    %v1785 = vrot.slane %v1784, 4
    %v1786 = vadd.f32 %v1784, %v1785
    %v1787 = vrot.slane %v1786, 2
    %v1788 = vadd.f32 %v1786, %v1787
    %v1789 = vrot.slane %v1788, 1
    %v1790 = vadd.f32 %v1788, %v1789
    %v1791 = vadd.f32 %v1739, %v1747
    %v1792 = vrot.slane %v1791, 4
    %v1793 = vadd.f32 %v1791, %v1792
    %v1794 = vrot.slane %v1793, 2
    %v1795 = vadd.f32 %v1793, %v1794
    %v1796 = vrot.slane %v1795, 1
    %v1797 = vadd.f32 %v1795, %v1796
    %v1798 = vadd.f32 %v1740, %v1748
    %v1799 = vrot.slane %v1798, 4
    %v1800 = vadd.f32 %v1798, %v1799
    %v1801 = vrot.slane %v1800, 2
    %v1802 = vadd.f32 %v1800, %v1801
    %v1803 = vrot.slane %v1802, 1
    %v1804 = vadd.f32 %v1802, %v1803
    %v1805 = vmul.f32 %v1755, %v354
    %v1806 = vmul.f32 %v1762, %v354
    %v1807 = vmul.f32 %v1769, %v354
    %v1808 = vmul.f32 %v1776, %v354
    %v1809 = vmul.f32 %v1783, %v354
    %v1810 = vmul.f32 %v1790, %v354
    %v1811 = vmul.f32 %v1797, %v354
    %v1812 = vmul.f32 %v1804, %v354
    %v1813 = vadd.f32 %v1805, 0.8
    %v1814 = vadd.f32 %v1806, 0.8
    %v1815 = vadd.f32 %v1807, 0.8
    %v1816 = vadd.f32 %v1808, 0.8
    %v1817 = vadd.f32 %v1809, 0.8
    %v1818 = vadd.f32 %v1810, 0.8
    %v1819 = vadd.f32 %v1811, 0.8
    %v1820 = vadd.f32 %v1812, 0.8
    %v1821 = vrsqrt.pop %v1813
    %v1822 = vrsqrt.pop %v1814
    %v1823 = vrsqrt.pop %v1815
    %v1824 = vrsqrt.pop %v1816
    %v1825 = vrsqrt.pop %v1817
    %v1826 = vrsqrt.pop %v1818
    %v1827 = vrsqrt.pop %v1819
    %v1828 = vrsqrt.pop %v1820
    %v1829 = vmul.f32 %v1717, %v1821
    %v1830 = vmul.f32 %v1718, %v1822
    %v1831 = vmul.f32 %v1719, %v1823
    %v1832 = vmul.f32 %v1720, %v1824
    %v1833 = vmul.f32 %v1721, %v1825
    %v1834 = vmul.f32 %v1722, %v1826
    %v1835 = vmul.f32 %v1723, %v1827
    %v1836 = vmul.f32 %v1724, %v1828
    %v1837 = vmul.f32 %v1725, %v1821
    %v1838 = vmul.f32 %v1726, %v1822
    %v1839 = vmul.f32 %v1727, %v1823
    %v1840 = vmul.f32 %v1728, %v1824
    %v1841 = vmul.f32 %v1729, %v1825
    %v1842 = vmul.f32 %v1730, %v1826
    %v1843 = vmul.f32 %v1731, %v1827
    %v1844 = vmul.f32 %v1732, %v1828
    %v1845 = vmul.f32 %v1829, 0.2
    %v1846 = vmul.f32 %v1830, 0.2
    %v1847 = vmul.f32 %v1831, 0.2
    %v1848 = vmul.f32 %v1832, 0.2
    %v1849 = vmul.f32 %v1833, 0.2
    %v1850 = vmul.f32 %v1834, 0.2
    %v1851 = vmul.f32 %v1835, 0.2
    %v1852 = vmul.f32 %v1836, 0.2
    %v1853 = vmul.f32 %v1837, 0.2
    %v1854 = vmul.f32 %v1838, 0.2
    %v1855 = vmul.f32 %v1839, 0.2
    %v1856 = vmul.f32 %v1840, 0.2
    %v1857 = vmul.f32 %v1841, 0.2
    %v1858 = vmul.f32 %v1842, 0.2
    %v1859 = vmul.f32 %v1843, 0.2
    %v1860 = vmul.f32 %v1844, 0.2
    %v1861 = vmax.f32 %v1829, %v1845
    %v1862 = vmax.f32 %v1830, %v1846
    %v1863 = vmax.f32 %v1831, %v1847
    %v1864 = vmax.f32 %v1832, %v1848
    %v1865 = vmax.f32 %v1833, %v1849
    %v1866 = vmax.f32 %v1834, %v1850
    %v1867 = vmax.f32 %v1835, %v1851
    %v1868 = vmax.f32 %v1836, %v1852
    %v1869 = vmax.f32 %v1837, %v1853
    %v1870 = vmax.f32 %v1838, %v1854
    %v1871 = vmax.f32 %v1839, %v1855
    %v1872 = vmax.f32 %v1840, %v1856
    %v1873 = vmax.f32 %v1841, %v1857
    %v1874 = vmax.f32 %v1842, %v1858
    %v1875 = vmax.f32 %v1843, %v1859
    %v1876 = vmax.f32 %v1844, %v1860
    %s1877 = smul.u32 4, 128
    %s1878 = smul.u32 %s1877, 1
    %s1879 = sshll.u32 %s1878, 4
    %1880 = dma.done %s97, %s1879
    %v1881 = vld [vmem:[#allocation3] sm:$0xff]
    %v1882 = vld [vmem:[#allocation3 + $0x8] sm:$0xff]
    %v1883 = vld [vmem:[#allocation3 + $0x10] sm:$0xff]
    %v1884 = vld [vmem:[#allocation3 + $0x18] sm:$0xff]
    %v1885 = vld [vmem:[#allocation3 + $0x20] sm:$0xff]
    %v1886 = vld [vmem:[#allocation3 + $0x28] sm:$0xff]
    %v1887 = vld [vmem:[#allocation3 + $0x30] sm:$0xff]
    %v1888 = vld [vmem:[#allocation3 + $0x38] sm:$0xff]
    %v1889 = vld [vmem:[#allocation3 + $0x40] sm:$0xff]
    %v1890 = vld [vmem:[#allocation3 + $0x48] sm:$0xff]
    %v1891 = vld [vmem:[#allocation3 + $0x50] sm:$0xff]
    %v1892 = vld [vmem:[#allocation3 + $0x58] sm:$0xff]
    %v1893 = vld [vmem:[#allocation3 + $0x60] sm:$0xff]
    %v1894 = vld [vmem:[#allocation3 + $0x68] sm:$0xff]
    %v1895 = vld [vmem:[#allocation3 + $0x70] sm:$0xff]
    %v1896 = vld [vmem:[#allocation3 + $0x78] sm:$0xff]
    %v1897 = vld [vmem:[#allocation3 + $0x80] sm:$0xff]
    %v1898 = vld [vmem:[#allocation3 + $0x88] sm:$0xff]
    %v1899 = vld [vmem:[#allocation3 + $0x90] sm:$0xff]
    %v1900 = vld [vmem:[#allocation3 + $0x98] sm:$0xff]
    %v1901 = vld [vmem:[#allocation3 + $0xa0] sm:$0xff]
    %v1902 = vld [vmem:[#allocation3 + $0xa8] sm:$0xff]
    %v1903 = vld [vmem:[#allocation3 + $0xb0] sm:$0xff]
    %v1904 = vld [vmem:[#allocation3 + $0xb8] sm:$0xff]
    %v1905 = vld [vmem:[#allocation3 + $0xc0] sm:$0xff]
    %v1906 = vld [vmem:[#allocation3 + $0xc8] sm:$0xff]
    %v1907 = vld [vmem:[#allocation3 + $0xd0] sm:$0xff]
    %v1908 = vld [vmem:[#allocation3 + $0xd8] sm:$0xff]
    %v1909 = vld [vmem:[#allocation3 + $0xe0] sm:$0xff]
    %v1910 = vld [vmem:[#allocation3 + $0xe8] sm:$0xff]
    %v1911 = vld [vmem:[#allocation3 + $0xf0] sm:$0xff]
    %v1912 = vld [vmem:[#allocation3 + $0xf8] sm:$0xff]
    %v1913 = vld [vmem:[#allocation3 + $0x100] sm:$0xff]
    %v1914 = vld [vmem:[#allocation3 + $0x108] sm:$0xff]
    %v1915 = vld [vmem:[#allocation3 + $0x110] sm:$0xff]
    %v1916 = vld [vmem:[#allocation3 + $0x118] sm:$0xff]
    %v1917 = vld [vmem:[#allocation3 + $0x120] sm:$0xff]
    %v1918 = vld [vmem:[#allocation3 + $0x128] sm:$0xff]
    %v1919 = vld [vmem:[#allocation3 + $0x130] sm:$0xff]
    %v1920 = vld [vmem:[#allocation3 + $0x138] sm:$0xff]
    %v1921 = vld [vmem:[#allocation3 + $0x140] sm:$0xff]
    %v1922 = vld [vmem:[#allocation3 + $0x148] sm:$0xff]
    %v1923 = vld [vmem:[#allocation3 + $0x150] sm:$0xff]
    %v1924 = vld [vmem:[#allocation3 + $0x158] sm:$0xff]
    %v1925 = vld [vmem:[#allocation3 + $0x160] sm:$0xff]
    %v1926 = vld [vmem:[#allocation3 + $0x168] sm:$0xff]
    %v1927 = vld [vmem:[#allocation3 + $0x170] sm:$0xff]
    %v1928 = vld [vmem:[#allocation3 + $0x178] sm:$0xff]
    %v1929 = vld [vmem:[#allocation3 + $0x180] sm:$0xff]
    %v1930 = vld [vmem:[#allocation3 + $0x188] sm:$0xff]
    %v1931 = vld [vmem:[#allocation3 + $0x190] sm:$0xff]
    %v1932 = vld [vmem:[#allocation3 + $0x198] sm:$0xff]
    %v1933 = vld [vmem:[#allocation3 + $0x1a0] sm:$0xff]
    %v1934 = vld [vmem:[#allocation3 + $0x1a8] sm:$0xff]
    %v1935 = vld [vmem:[#allocation3 + $0x1b0] sm:$0xff]
    %v1936 = vld [vmem:[#allocation3 + $0x1b8] sm:$0xff]
    %v1937 = vld [vmem:[#allocation3 + $0x1c0] sm:$0xff]
    %v1938 = vld [vmem:[#allocation3 + $0x1c8] sm:$0xff]
    %v1939 = vld [vmem:[#allocation3 + $0x1d0] sm:$0xff]
    %v1940 = vld [vmem:[#allocation3 + $0x1d8] sm:$0xff]
    %v1941 = vld [vmem:[#allocation3 + $0x1e0] sm:$0xff]
    %v1942 = vld [vmem:[#allocation3 + $0x1e8] sm:$0xff]
    %v1943 = vld [vmem:[#allocation3 + $0x1f0] sm:$0xff]
    %v1944 = vld [vmem:[#allocation3 + $0x1f8] sm:$0xff]
    %v1945 = vpack.c.bf16 %v1869, %v1861
    %v1946 = vpack.c.bf16 %v1870, %v1862
    %v1947 = vpack.c.bf16 %v1871, %v1863
    %v1948 = vpack.c.bf16 %v1872, %v1864
    %v1949 = vpack.c.bf16 %v1873, %v1865
    %v1950 = vpack.c.bf16 %v1874, %v1866
    %v1951 = vpack.c.bf16 %v1875, %v1867
    %v1952 = vpack.c.bf16 %v1876, %v1868
    %v1953 = vld [vmem:[#allocation9 + $0xf] sm:$0x1]
    %v1955 = vlaneseq
    %v1956 = vshrl.u32 %v1955, 7
    %v1957 = vsub.s32 0, %v1956
    %v1958 = vrot.slane %v1953, %v1957
    %1960 = vmatprep.subr.bf16.mxu0 0
    %1961 = vmatpush1.bf16.msra.mxu0 %v1881
    %1962 = vmatprep.subr.bf16.mxu0 0
    %1963 = vmatpush1.bf16.msra.mxu0 %v1882
    %1964 = vmatprep.subr.bf16.mxu0 0
    %1965 = vmatpush1.bf16.msra.mxu0 %v1883
    %1966 = vmatprep.subr.bf16.mxu0 0
    %1967 = vmatpush1.bf16.msra.mxu0 %v1884
    %1968 = vmatprep.subr.bf16.mxu0 0
    %1969 = vmatpush1.bf16.msra.mxu0 %v1885
    %1970 = vmatprep.subr.bf16.mxu0 0
    %1971 = vmatpush1.bf16.msra.mxu0 %v1886
    %1972 = vmatprep.subr.bf16.mxu0 0
    %1973 = vmatpush1.bf16.msra.mxu0 %v1887
    %1974 = vmatprep.subr.bf16.mxu0 0
    %1975 = vmatpush1.bf16.msra.mxu0 %v1888
    %1976 = vmatprep.subr.bf16.mxu0 0
    %1977 = vmatpush1.bf16.msra.mxu0 %v1889
    %1978 = vmatprep.subr.bf16.mxu0 0
    %1979 = vmatpush1.bf16.msra.mxu0 %v1890
    %1980 = vmatprep.subr.bf16.mxu0 0
    %1981 = vmatpush1.bf16.msra.mxu0 %v1891
    %1982 = vmatprep.subr.bf16.mxu0 0
    %1983 = vmatpush1.bf16.msra.mxu0 %v1892
    %1984 = vmatprep.subr.bf16.mxu0 0
    %1985 = vmatpush1.bf16.msra.mxu0 %v1893
    %1986 = vmatprep.subr.bf16.mxu0 0
    %1987 = vmatpush1.bf16.msra.mxu0 %v1894
    %1988 = vmatprep.subr.bf16.mxu0 0
    %1989 = vmatpush1.bf16.msra.mxu0 %v1895
    %1990 = vmatprep.subr.bf16.mxu0 0
    %1991 = vmatpush1.bf16.msra.mxu0 %v1896
    %1992 = vmatprep.mubr.bf16.mxu0 %v1946
    %1993 = vmatmul.mubr.bf16.gmra.mrb[0].mxu0 %v1945
    %v1994 = vpop.f32.mrb[0].mxu0
    %v1995 = vadd.f32 %v1958, %v1994
    %v1996 = vpop.f32.mrb[0].mxu0
    %v1997 = vpop.f32.mrb[0].mxu0
    %v1998 = vadd.f32 %v1958, %v1997
    %v1999 = vpop.f32.mrb[0].mxu0
    %2000 = vdwg.mxu0
    %2001 = vmatprep.subr.bf16.mxu0 0
    %2002 = vmatpush1.bf16.msra.mxu0 %v1897
    %2003 = vmatprep.subr.bf16.mxu0 0
    %2004 = vmatpush1.bf16.msra.mxu0 %v1898
    %2005 = vmatprep.subr.bf16.mxu0 0
    %2006 = vmatpush1.bf16.msra.mxu0 %v1899
    %2007 = vmatprep.subr.bf16.mxu0 0
    %2008 = vmatpush1.bf16.msra.mxu0 %v1900
    %2009 = vmatprep.subr.bf16.mxu0 0
    %2010 = vmatpush1.bf16.msra.mxu0 %v1901
    %2011 = vmatprep.subr.bf16.mxu0 0
    %2012 = vmatpush1.bf16.msra.mxu0 %v1902
    %2013 = vmatprep.subr.bf16.mxu0 0
    %2014 = vmatpush1.bf16.msra.mxu0 %v1903
    %2015 = vmatprep.subr.bf16.mxu0 0
    %2016 = vmatpush1.bf16.msra.mxu0 %v1904
    %2017 = vmatprep.subr.bf16.mxu0 0
    %2018 = vmatpush1.bf16.msra.mxu0 %v1905
    %2019 = vmatprep.subr.bf16.mxu0 0
    %2020 = vmatpush1.bf16.msra.mxu0 %v1906
    %2021 = vmatprep.subr.bf16.mxu0 0
    %2022 = vmatpush1.bf16.msra.mxu0 %v1907
    %2023 = vmatprep.subr.bf16.mxu0 0
    %2024 = vmatpush1.bf16.msra.mxu0 %v1908
    %2025 = vmatprep.subr.bf16.mxu0 0
    %2026 = vmatpush1.bf16.msra.mxu0 %v1909
    %2027 = vmatprep.subr.bf16.mxu0 0
    %2028 = vmatpush1.bf16.msra.mxu0 %v1910
    %2029 = vmatprep.subr.bf16.mxu0 0
    %2030 = vmatpush1.bf16.msra.mxu0 %v1911
    %2031 = vmatprep.subr.bf16.mxu0 0
    %2032 = vmatpush1.bf16.msra.mxu0 %v1912
    %2033 = vmatprep.mubr.bf16.mxu0 %v1948
    %2034 = vmatmul.mubr.bf16.gmra.mrb[0].mxu0 %v1947
    %v2035 = vpop.f32.mrb[0].mxu0
    %v2036 = vadd.f32 %v1995, %v2035
    %v2037 = vpop.f32.mrb[0].mxu0
    %v2038 = vpop.f32.mrb[0].mxu0
    %v2039 = vadd.f32 %v1998, %v2038
    %v2040 = vpop.f32.mrb[0].mxu0
    %2041 = vdwg.mxu0
    %2042 = vmatprep.subr.bf16.mxu0 0
    %2043 = vmatpush1.bf16.msra.mxu0 %v1913
    %2044 = vmatprep.subr.bf16.mxu0 0
    %2045 = vmatpush1.bf16.msra.mxu0 %v1914
    %2046 = vmatprep.subr.bf16.mxu0 0
    %2047 = vmatpush1.bf16.msra.mxu0 %v1915
    %2048 = vmatprep.subr.bf16.mxu0 0
    %2049 = vmatpush1.bf16.msra.mxu0 %v1916
    %2050 = vmatprep.subr.bf16.mxu0 0
    %2051 = vmatpush1.bf16.msra.mxu0 %v1917
    %2052 = vmatprep.subr.bf16.mxu0 0
    %2053 = vmatpush1.bf16.msra.mxu0 %v1918
    %2054 = vmatprep.subr.bf16.mxu0 0
    %2055 = vmatpush1.bf16.msra.mxu0 %v1919
    %2056 = vmatprep.subr.bf16.mxu0 0
    %2057 = vmatpush1.bf16.msra.mxu0 %v1920
    %2058 = vmatprep.subr.bf16.mxu0 0
    %2059 = vmatpush1.bf16.msra.mxu0 %v1921
    %2060 = vmatprep.subr.bf16.mxu0 0
    %2061 = vmatpush1.bf16.msra.mxu0 %v1922
    %2062 = vmatprep.subr.bf16.mxu0 0
    %2063 = vmatpush1.bf16.msra.mxu0 %v1923
    %2064 = vmatprep.subr.bf16.mxu0 0
    %2065 = vmatpush1.bf16.msra.mxu0 %v1924
    %2066 = vmatprep.subr.bf16.mxu0 0
    %2067 = vmatpush1.bf16.msra.mxu0 %v1925
    %2068 = vmatprep.subr.bf16.mxu0 0
    %2069 = vmatpush1.bf16.msra.mxu0 %v1926
    %2070 = vmatprep.subr.bf16.mxu0 0
    %2071 = vmatpush1.bf16.msra.mxu0 %v1927
    %2072 = vmatprep.subr.bf16.mxu0 0
    %2073 = vmatpush1.bf16.msra.mxu0 %v1928
    %2074 = vmatprep.mubr.bf16.mxu0 %v1950
    %2075 = vmatmul.mubr.bf16.gmra.mrb[0].mxu0 %v1949
    %v2076 = vpop.f32.mrb[0].mxu0
    %v2077 = vadd.f32 %v2036, %v2076
    %v2078 = vpop.f32.mrb[0].mxu0
    %v2079 = vpop.f32.mrb[0].mxu0
    %v2080 = vadd.f32 %v2039, %v2079
    %v2081 = vpop.f32.mrb[0].mxu0
    %2082 = vdwg.mxu0
    %2083 = vmatprep.subr.bf16.mxu0 0
    %2084 = vmatpush1.bf16.msra.mxu0 %v1929
    %2085 = vmatprep.subr.bf16.mxu0 0
    %2086 = vmatpush1.bf16.msra.mxu0 %v1930
    %2087 = vmatprep.subr.bf16.mxu0 0
    %2088 = vmatpush1.bf16.msra.mxu0 %v1931
    %2089 = vmatprep.subr.bf16.mxu0 0
    %2090 = vmatpush1.bf16.msra.mxu0 %v1932
    %2091 = vmatprep.subr.bf16.mxu0 0
    %2092 = vmatpush1.bf16.msra.mxu0 %v1933
    %2093 = vmatprep.subr.bf16.mxu0 0
    %2094 = vmatpush1.bf16.msra.mxu0 %v1934
    %2095 = vmatprep.subr.bf16.mxu0 0
    %2096 = vmatpush1.bf16.msra.mxu0 %v1935
    %2097 = vmatprep.subr.bf16.mxu0 0
    %2098 = vmatpush1.bf16.msra.mxu0 %v1936
    %2099 = vmatprep.subr.bf16.mxu0 0
    %2100 = vmatpush1.bf16.msra.mxu0 %v1937
    %2101 = vmatprep.subr.bf16.mxu0 0
    %2102 = vmatpush1.bf16.msra.mxu0 %v1938
    %2103 = vmatprep.subr.bf16.mxu0 0
    %2104 = vmatpush1.bf16.msra.mxu0 %v1939
    %2105 = vmatprep.subr.bf16.mxu0 0
    %2106 = vmatpush1.bf16.msra.mxu0 %v1940
    %2107 = vmatprep.subr.bf16.mxu0 0
    %2108 = vmatpush1.bf16.msra.mxu0 %v1941
    %2109 = vmatprep.subr.bf16.mxu0 0
    %2110 = vmatpush1.bf16.msra.mxu0 %v1942
    %2111 = vmatprep.subr.bf16.mxu0 0
    %2112 = vmatpush1.bf16.msra.mxu0 %v1943
    %2113 = vmatprep.subr.bf16.mxu0 0
    %2114 = vmatpush1.bf16.msra.mxu0 %v1944
    %2115 = vmatprep.mubr.bf16.mxu0 %v1952
    %2116 = vmatmul.mubr.bf16.gmra.mrb[0].mxu0 %v1951
    %v2117 = vpop.f32.mrb[0].mxu0
    %v2118 = vadd.f32 %v2077, %v2117
    %v2119 = vpop.f32.mrb[0].mxu0
    %v2120 = vpop.f32.mrb[0].mxu0
    %v2121 = vadd.f32 %v2080, %v2120
    %v2122 = vpop.f32.mrb[0].mxu0
    %2123 = vdwg.mxu0
    %v2124 = vtanh.pop %v2118
    %v2125 = vtanh.pop %v2121
    %2126 = vst [vmem:[%s7] sm:$0xff] %v2124
    %2127 = vst [vmem:[%s7 + $0x8] sm:$0xff] %v2125
    // Predicated region
    $region38: #{generator_forward.1} parent=1 // pred_check
      _
    $region39: #{generator_forward.1} parent=1 // pred_check_branch
      %2129 = sbr.rel (0) target = $region41
    $region40: #{generator_forward.1} parent=1 // pred_region
      _
    $region41: #{generator_forward.1} parent=1 // pred_fallthru
      _
    // Predicated region
    $region42: #{generator_forward.1} parent=1 // pred_check
      _
    $region43: #{generator_forward.1} parent=1 // pred_check_branch
      %2131 = sbr.rel (0) target = $region45
    $region44: #{generator_forward.1} parent=1 // pred_region
      _
    $region45: #{generator_forward.1} parent=1 // pred_fallthru
      _
    %2132 = vsyncpa [#allocation6], 1
    %2133 = vsyncpa [#allocation8], 1
  %2134 = vsyncmov [#allocation4]
  %s2135 = vpop.sfrf %2134
  %p2136 = scmp.eq.s32.totalorder %s2135, 0
  %p2137 = pneg %p2136
  %2139 = shalt.err (%p2137)
  %s2140 = scalar_lea.sflag [#allocation4], 1
  %2141 = vsyncmov %s2140
  %s2142 = vpop.sfrf %2141
  %p2143 = scmp.eq.s32.totalorder %s2142, 0
  %p2144 = pneg %p2143
  %2146 = shalt.err (%p2144)

</llo_original>
